<compile_context>
chip_gen: v5e
topology: v5e:2x2
jax: 0.10.0
libtpu: 0.0.40
codegen_flags: <defaults>
</compile_context>

<pallas_src>
import jax
import jax.numpy as jnp
from jax import lax
from jax.experimental import pallas as pl
from jax.experimental.pallas import tpu as pltpu


def _round_up(n, m):
    return ((n + m - 1) // m) * m


def _hernn_kernel(x_ref, e_ref, wt_ref, wb_ref, b_ref, wh_ref, f_ref,
                  y_ref, tanh_scr):
    """Fused forward (residual tanh MLP) + analytic reverse-mode gradient."""
    n_layers = wt_ref.shape[0]
    b_tile = x_ref.shape[0]
    wp = wt_ref.shape[-1]

    # z0 = x.repeat(1, expansion), expressed as a lane-dense bf16 MXU matmul
    # with the 0/1 expansion matrix E (exact in bf16), f32 accumulation.
    z0 = jnp.dot(x_ref[...].astype(jnp.bfloat16), e_ref[...],
                 preferred_element_type=jnp.float32)                 # [Bt, wp] f32

    def fwd_step(l, z):
        # torch Linear: z @ W^T + b ; wt_ref holds W^T so this is a plain dot.
        a = jnp.dot(z.astype(jnp.bfloat16), wt_ref[l],
                    preferred_element_type=jnp.float32) + b_ref[l]
        t = jnp.tanh(a)
        # bf16 stash: half the VMEM + half the vst traffic; sech^2 error ~1e-3.
        tanh_scr[l] = t.astype(jnp.bfloat16)
        return z + t                                # residual stays f32

    def bwd_step(l, g):
        # g_l = g_{l+1} + (g_{l+1} * sech^2(a_l)) @ W_l ; wb_ref holds W.
        t = tanh_scr[l].astype(jnp.float32)
        sech2 = 1.0 - t * t
        return g + jnp.dot((g * sech2).astype(jnp.bfloat16), wb_ref[l],
                           preferred_element_type=jnp.float32)

    # dH/dz_L = wh (head bias does not affect the gradient).
    g0 = jnp.broadcast_to(wh_ref[...], (b_tile, wp)).astype(jnp.float32)

    if n_layers <= 8:
        # Shallow nets: static unroll (best LLO scheduling).
        z = z0
        for l in range(n_layers):
            z = fwd_step(l, z)
        g = g0
        for l in range(n_layers - 1, -1, -1):
            g = bwd_step(l, g)
    else:
        # Deep nets: bound code size / vreg pressure; activations live in the
        # VMEM scratch, not registers. NOTE: the forward loop's carry is unused
        # after the loop; the loop is kept alive by the tanh_scr ref-store
        # effects (effectful, so it is not DCE'd) -- do not "clean this up" by
        # moving the store out of the loop. unroll=2 restores cross-layer
        # MXU/EUP/VALU interleave without blowing up code size.
        _ = lax.fori_loop(0, n_layers, fwd_step, z0, unroll=2)
        g = lax.fori_loop(0, n_layers,
                          lambda i, gg: bwd_step(n_layers - 1 - i, gg), g0,
                          unroll=2)

    # Fold the `expansion` copies back onto x and apply the symplectic swap and
    # sign, all baked into the 0/±1 fold matrix F (exact in bf16) -> one
    # lane-dense bf16 MXU matmul followed by unmasked (lane-dense) stores.
    y_ref[...] = jnp.dot(g.astype(jnp.bfloat16), f_ref[...],
                         preferred_element_type=jnp.float32).astype(y_ref.dtype)


def hernn_forward(x, W, b, wh, *, d, expansion, b_tile=None):
    """HERNN forward.

    x  : [B, 2d]
    W  : [L, width, width]  (torch.nn.Linear layout: [out, in]), width = expansion*2d
    b  : [L, width]
    wh : [width]            (Hamiltonian head weight; its bias is irrelevant)
    """
    n_layers, width, _ = W.shape
    B, two_d = x.shape
    assert two_d == 2 * d
    assert width == expansion * two_d
    assert W.shape == (n_layers, width, width)
    assert n_layers >= 1

    f32 = jnp.float32
    bf16 = jnp.bfloat16
    wp = _round_up(width, 128)      # lane-dense feature width
    op = _round_up(two_d, 128)      # lane-dense output slab width

    # Zero-pad parameters to lane-dense width. Padded lanes stay exactly zero
    # through both the forward and the backward recursions (tanh(0)=0); do NOT
    # replace the zero padding with anything nonzero.
    Wp = jnp.zeros((n_layers, wp, wp), f32).at[:, :width, :width].set(W.astype(f32))
    bp = jnp.zeros((n_layers, 1, wp), f32).at[:, 0, :width].set(b.astype(f32))
    whp = jnp.zeros((1, wp), f32).at[0, :width].set(wh.astype(f32))

    # Pre-transposed + plain copies so neither in-kernel matmul needs an XLU
    # weight transpose; bf16 feeds the MXU at full rate with f32 accumulate.
    Wt = jnp.swapaxes(Wp, 1, 2).astype(bf16)   # forward:  z @ W^T
    Wb = Wp.astype(bf16)                       # backward: (g*sech2) @ W
    # TODO(synk): on v7x, drop Wb and drive bwd_step from Wt via a trans_b
    # contraction (halves resident weight VMEM + HBM traffic) once the XLU /
    # vxpose cost of that lowering has been benchmarked.

    # Expansion matrix: z0 = x @ E  <=>  x.repeat(1, expansion); 0/1 -> exact bf16.
    E = jnp.zeros((two_d, wp), f32)
    rows = jnp.arange(two_d)
    for e in range(expansion):
        E = E.at[rows, e * two_d + rows].set(1.0)
    E = E.astype(bf16)

    # Fold matrix: y = g @ F sums the expansion copies back onto x and bakes in
    # the symplectic swap  y = [gx[:, d:], -gx[:, :d]]; 0/±1 -> exact bf16.
    F = jnp.zeros((wp, op), f32)
    jd = jnp.arange(d)
    for e in range(expansion):
        base = e * two_d
        F = F.at[base + d + jd, jd].set(1.0)
        F = F.at[base + jd, d + jd].set(-1.0)
    F = F.astype(bf16)

    # Batch tile: tie to padded width (bigger tiles at tiny widths where the
    # kernel is overhead/VPU-bound, smaller at large widths where [tile,wp]
    # f32 temporaries dominate VMEM on v7x), then halve until the batch grid
    # has >= 4 steps so each v7x TensorCore gets >= 2 pipelined steps.
    if b_tile is None:
        if wp <= 256:
            b_tile = 512
        elif wp >= 1024:
            b_tile = 128
        else:
            b_tile = 256
    tile = min(_round_up(b_tile, 8), _round_up(B, 8))
    while tile > 8 and (_round_up(B, 8) + tile - 1) // tile < 4:
        tile = max(8, _round_up(tile // 2, 8))

    Bp = _round_up(B, tile)
    x_p = x.astype(f32)
    if Bp != B:
        x_p = jnp.zeros((Bp, two_d), f32).at[:B].set(x_p)
    num_tiles = Bp // tile

    # Explicit VMEM budget -> vmem_limit_bytes (v5e scoped default is 16 MiB;
    # v7x has only 64 MiB physical, 32 MiB scoped default).
    weights_bytes = 2 * n_layers * wp * wp * 2              # Wt + Wb, bf16, Buffered(1)
    const_bytes = (n_layers * wp * 4                        # biases (f32)
                   + two_d * wp * 2 + wp * op * 2           # E, F (bf16)
                   + wp * 4)                                # wh (f32)
    scratch_bytes = n_layers * tile * wp * 2                # bf16 activation stash
    io_bytes = 2 * tile * two_d * 4 + 2 * tile * op * 4     # double-buffered x / y tiles
    temps_bytes = 8 * tile * wp * 4                         # live f32 temporaries
    budget = weights_bytes + const_bytes + scratch_bytes + io_bytes + temps_bytes
    vmem_limit = int(min(max(2 * budget + (8 << 20), 32 << 20), 96 << 20))
    # TODO(synk): for configs whose (Wt, Wb) working set blows this budget on
    # v7x, stream layer weights from HBM (memory_space=pl.ANY + manual
    # pltpu.make_async_copy double-buffer) instead of keeping them resident.

    # Advisory cost estimate so XLA schedules the surrounding pad/transpose and
    # output slice around the kernel instead of serializing with it.
    matmul_flops = 2 * Bp * (two_d * wp + 2 * n_layers * wp * wp + wp * op)
    elementwise_flops = 10 * Bp * n_layers * wp
    cost = pl.CostEstimate(
        flops=int(matmul_flops + elementwise_flops),
        transcendentals=int(Bp * n_layers * wp),
        bytes_accessed=int(weights_bytes + const_bytes + Bp * two_d * 4 + Bp * op * 4),
    )

    resident = pl.Buffered(1)   # constant block index -> no double buffering
    in_specs = [
        pl.BlockSpec((tile, two_d), lambda i: (i, 0)),                          # x tile
        pl.BlockSpec((two_d, wp), lambda i: (0, 0), pipeline_mode=resident),    # E
        pl.BlockSpec((n_layers, wp, wp), lambda i: (0, 0, 0),
                     pipeline_mode=resident),                                   # W^T
        pl.BlockSpec((n_layers, wp, wp), lambda i: (0, 0, 0),
                     pipeline_mode=resident),                                   # W
        pl.BlockSpec((n_layers, 1, wp), lambda i: (0, 0, 0),
                     pipeline_mode=resident),                                   # b
        pl.BlockSpec((1, wp), lambda i: (0, 0), pipeline_mode=resident),        # wh
        pl.BlockSpec((wp, op), lambda i: (0, 0), pipeline_mode=resident),       # fold
    ]

    y_pad = pl.pallas_call(
        _hernn_kernel,
        out_shape=jax.ShapeDtypeStruct((Bp, op), x.dtype),
        grid_spec=pltpu.PrefetchScalarGridSpec(
            num_scalar_prefetch=0,
            grid=(num_tiles,),
            in_specs=in_specs,
            out_specs=pl.BlockSpec((tile, op), lambda i: (i, 0)),
            scratch_shapes=[pltpu.VMEM((n_layers, tile, wp), jnp.bfloat16)],
        ),
        compiler_params=pltpu.CompilerParams(
            # Batch grid axis is independent -> shard across v7x's 2 TensorCores.
            dimension_semantics=("parallel",),
            vmem_limit_bytes=vmem_limit,
        ),
        cost_estimate=cost,
    )(x_p, E, Wt, Wb, bp, whp, F)

    return y_pad[:B, :two_d]


def _reference_forward(x, W, b, wh, *, d, expansion):
    """Pure-JAX reference mirroring the PyTorch module (autograd for the grad)."""
    def hamiltonian_sum(xx):
        z = jnp.tile(xx, (1, expansion))
        for l in range(W.shape[0]):
            z = z + jnp.tanh(z @ W[l].T + b[l])
        return jnp.sum(z @ wh)          # head bias does not affect the gradient
    g = jax.grad(hamiltonian_sum)(x)
    return jnp.concatenate([g[:, d:], -g[:, :d]], axis=1)


if __name__ == "__main__":
    # Module-consistent shapes: d=4, depth=3, expansion=4 -> width=32 (padded to
    # 128 lanes in the kernel). B=512 exercises the 4-step batch grid.
    d, depth, expansion = 4, 3, 4
    width = expansion * 2 * d
    n_layers = depth - 1
    B = 512

    key = jax.random.PRNGKey(0)
    kx, kw, kb, kwh = jax.random.split(key, 4)

    bound = 1.0 / jnp.sqrt(jnp.float32(width))                 # torch Linear init scale
    x = jax.random.normal(kx, (B, 2 * d), dtype=jnp.float32)
    W = jax.random.uniform(kw, (n_layers, width, width),
                           minval=-bound, maxval=bound, dtype=jnp.float32)
    b = jax.random.uniform(kb, (n_layers, width),
                           minval=-bound, maxval=bound, dtype=jnp.float32)
    wh = jax.random.uniform(kwh, (width,),
                            minval=-bound, maxval=bound, dtype=jnp.float32)

    y = hernn_forward(x, W, b, wh, d=d, expansion=expansion)
    y = jax.block_until_ready(y)

    y_ref = _reference_forward(x, W, b, wh, d=d, expansion=expansion)
    if not jnp.allclose(y, y_ref, rtol=2e-2, atol=2e-2):
        raise AssertionError("Pallas HERNN output does not match JAX reference")

    print("KERNEL_OK")
</pallas_src>

<mosaic_0001>
module attributes {stable_mosaic.version = 11 : i64} {
  func.func @_hernn_kernel(%arg0: i32, %arg1: memref<128x8xf32, #tpu.memory_space<vmem>>, %arg2: memref<8x128xbf16, #tpu.memory_space<vmem>>, %arg3: memref<2x128x128xbf16, #tpu.memory_space<vmem>>, %arg4: memref<2x128x128xbf16, #tpu.memory_space<vmem>>, %arg5: memref<2x1x128xf32, #tpu.memory_space<vmem>>, %arg6: memref<1x128xf32, #tpu.memory_space<vmem>>, %arg7: memref<128x128xbf16, #tpu.memory_space<vmem>>, %arg8: memref<128x128xf32, #tpu.memory_space<vmem>>, %arg9: memref<2x128x128xbf16, #tpu.memory_space<vmem>>) attributes {dimension_semantics = [#tpu.dimension_semantics<parallel>], iteration_bounds = array<i64: 4>, scalar_prefetch = 0 : i64, scratch_operands = 1 : i64, tpu.core_type = #tpu.core_type<tc>, window_params = [{transform_indices = @transform_0, window_bounds = array<i64: 128, 8>}, {pipeline_mode = #tpu.pipeline_mode<synchronous>, transform_indices = @transform_1, window_bounds = array<i64: 8, 128>}, {pipeline_mode = #tpu.pipeline_mode<synchronous>, transform_indices = @transform_2, window_bounds = array<i64: 2, 128, 128>}, {pipeline_mode = #tpu.pipeline_mode<synchronous>, transform_indices = @transform_3, window_bounds = array<i64: 2, 128, 128>}, {pipeline_mode = #tpu.pipeline_mode<synchronous>, transform_indices = @transform_4, window_bounds = array<i64: 2, 1, 128>}, {pipeline_mode = #tpu.pipeline_mode<synchronous>, transform_indices = @transform_5, window_bounds = array<i64: 1, 128>}, {pipeline_mode = #tpu.pipeline_mode<synchronous>, transform_indices = @transform_6, window_bounds = array<i64: 128, 128>}, {transform_indices = @transform_7, window_bounds = array<i64: 128, 128>}]} {
    %c0 = arith.constant 0 : index
    %c0_0 = arith.constant 0 : index
    %0 = vector.load %arg1[%c0, %c0_0] : memref<128x8xf32, #tpu.memory_space<vmem>>, vector<128x8xf32>
    %1 = arith.truncf %0 : vector<128x8xf32> to vector<128x8xbf16>
    %c0_1 = arith.constant 0 : index
    %c0_2 = arith.constant 0 : index
    %2 = vector.load %arg2[%c0_1, %c0_2] : memref<8x128xbf16, #tpu.memory_space<vmem>>, vector<8x128xbf16>
    %cst = arith.constant dense<0.000000e+00> : vector<128x128xf32>
    %3 = tpu.matmul %1, %2, %cst {dimension_numbers = #tpu.dot_dimension_numbers<[1], [0], [0], [1], [0, 0, 1, 1], [], []>} : vector<128x8xbf16>, vector<8x128xbf16>, vector<128x128xf32> -> vector<128x128xf32>
    %c0_3 = arith.constant 0 : index
    %c0_4 = arith.constant 0 : index
    %4 = vector.load %arg6[%c0_3, %c0_4] : memref<1x128xf32, #tpu.memory_space<vmem>>, vector<1x128xf32>
    %5 = vector.shape_cast %4 : vector<1x128xf32> to vector<1x128xf32>
    %6 = vector.broadcast %5 : vector<1x128xf32> to vector<128x128xf32>
    %7 = arith.truncf %3 : vector<128x128xf32> to vector<128x128xbf16>
    %c0_5 = arith.constant 0 : index
    %c0_6 = arith.constant 0 : index
    %c0_7 = arith.constant 0 : index
    %8 = vector.load %arg3[%c0_5, %c0_6, %c0_7] : memref<2x128x128xbf16, #tpu.memory_space<vmem>>, vector<1x128x128xbf16>
    %9 = vector.shape_cast %8 : vector<1x128x128xbf16> to vector<128x128xbf16>
    %cst_8 = arith.constant dense<0.000000e+00> : vector<128x128xf32>
    %10 = tpu.matmul %7, %9, %cst_8 {dimension_numbers = #tpu.dot_dimension_numbers<[1], [0], [0], [1], [0, 0, 1, 1], [], []>} : vector<128x128xbf16>, vector<128x128xbf16>, vector<128x128xf32> -> vector<128x128xf32>
    %c0_9 = arith.constant 0 : index
    %c0_10 = arith.constant 0 : index
    %c0_11 = arith.constant 0 : index
    %11 = vector.load %arg5[%c0_9, %c0_10, %c0_11] : memref<2x1x128xf32, #tpu.memory_space<vmem>>, vector<1x1x128xf32>
    %12 = vector.shape_cast %11 : vector<1x1x128xf32> to vector<1x128xf32>
    %13 = vector.broadcast %12 : vector<1x128xf32> to vector<128x128xf32>
    %14 = arith.addf %10, %13 : vector<128x128xf32>
    %15 = math.tanh %14 : vector<128x128xf32>
    %16 = arith.truncf %15 : vector<128x128xf32> to vector<128x128xbf16>
    %c0_12 = arith.constant 0 : index
    %c0_13 = arith.constant 0 : index
    %c0_14 = arith.constant 0 : index
    %17 = vector.load %arg9[%c0_12, %c0_13, %c0_14] : memref<2x128x128xbf16, #tpu.memory_space<vmem>>, vector<1x128x128xbf16>
    %18 = vector.shape_cast %17 : vector<1x128x128xbf16> to vector<128x128xbf16>
    %19 = vector.shape_cast %16 : vector<128x128xbf16> to vector<1x128x128xbf16>
    tpu.vector_store %arg9[%c0_12, %c0_13, %c0_14], %19 {strides = array<i32>} : memref<2x128x128xbf16, #tpu.memory_space<vmem>>, vector<1x128x128xbf16>,
    %20 = arith.addf %3, %15 : vector<128x128xf32>
    %21 = arith.truncf %20 : vector<128x128xf32> to vector<128x128xbf16>
    %c1 = arith.constant 1 : index
    %c0_15 = arith.constant 0 : index
    %c0_16 = arith.constant 0 : index
    %22 = vector.load %arg3[%c1, %c0_15, %c0_16] : memref<2x128x128xbf16, #tpu.memory_space<vmem>>, vector<1x128x128xbf16>
    %23 = vector.shape_cast %22 : vector<1x128x128xbf16> to vector<128x128xbf16>
    %cst_17 = arith.constant dense<0.000000e+00> : vector<128x128xf32>
    %24 = tpu.matmul %21, %23, %cst_17 {dimension_numbers = #tpu.dot_dimension_numbers<[1], [0], [0], [1], [0, 0, 1, 1], [], []>} : vector<128x128xbf16>, vector<128x128xbf16>, vector<128x128xf32> -> vector<128x128xf32>
    %c1_18 = arith.constant 1 : index
    %c0_19 = arith.constant 0 : index
    %c0_20 = arith.constant 0 : index
    %25 = vector.load %arg5[%c1_18, %c0_19, %c0_20] : memref<2x1x128xf32, #tpu.memory_space<vmem>>, vector<1x1x128xf32>
    %26 = vector.shape_cast %25 : vector<1x1x128xf32> to vector<1x128xf32>
    %27 = vector.broadcast %26 : vector<1x128xf32> to vector<128x128xf32>
    %28 = arith.addf %24, %27 : vector<128x128xf32>
    %29 = math.tanh %28 : vector<128x128xf32>
    %30 = arith.truncf %29 : vector<128x128xf32> to vector<128x128xbf16>
    %c1_21 = arith.constant 1 : index
    %c0_22 = arith.constant 0 : index
    %c0_23 = arith.constant 0 : index
    %31 = vector.load %arg9[%c1_21, %c0_22, %c0_23] : memref<2x128x128xbf16, #tpu.memory_space<vmem>>, vector<1x128x128xbf16>
    %32 = vector.shape_cast %31 : vector<1x128x128xbf16> to vector<128x128xbf16>
    %33 = vector.shape_cast %30 : vector<128x128xbf16> to vector<1x128x128xbf16>
    tpu.vector_store %arg9[%c1_21, %c0_22, %c0_23], %33 {strides = array<i32>} : memref<2x128x128xbf16, #tpu.memory_space<vmem>>, vector<1x128x128xbf16>,
    %c1_24 = arith.constant 1 : index
    %c0_25 = arith.constant 0 : index
    %c0_26 = arith.constant 0 : index
    %34 = vector.load %arg9[%c1_24, %c0_25, %c0_26] : memref<2x128x128xbf16, #tpu.memory_space<vmem>>, vector<1x128x128xbf16>
    %35 = vector.shape_cast %34 : vector<1x128x128xbf16> to vector<128x128xbf16>
    %36 = arith.extf %35 : vector<128x128xbf16> to vector<128x128xf32>
    %37 = arith.mulf %36, %36 : vector<128x128xf32>
    %cst_27 = arith.constant 1.000000e+00 : f32
    %38 = vector.broadcast %cst_27 : f32 to vector<128x128xf32>
    %39 = arith.subf %38, %37 : vector<128x128xf32>
    %40 = arith.mulf %6, %39 : vector<128x128xf32>
    %41 = arith.truncf %40 : vector<128x128xf32> to vector<128x128xbf16>
    %c1_28 = arith.constant 1 : index
    %c0_29 = arith.constant 0 : index
    %c0_30 = arith.constant 0 : index
    %42 = vector.load %arg4[%c1_28, %c0_29, %c0_30] : memref<2x128x128xbf16, #tpu.memory_space<vmem>>, vector<1x128x128xbf16>
    %43 = vector.shape_cast %42 : vector<1x128x128xbf16> to vector<128x128xbf16>
    %cst_31 = arith.constant dense<0.000000e+00> : vector<128x128xf32>
    %44 = tpu.matmul %41, %43, %cst_31 {dimension_numbers = #tpu.dot_dimension_numbers<[1], [0], [0], [1], [0, 0, 1, 1], [], []>} : vector<128x128xbf16>, vector<128x128xbf16>, vector<128x128xf32> -> vector<128x128xf32>
    %45 = arith.addf %6, %44 : vector<128x128xf32>
    %c0_32 = arith.constant 0 : index
    %c0_33 = arith.constant 0 : index
    %c0_34 = arith.constant 0 : index
    %46 = vector.load %arg9[%c0_32, %c0_33, %c0_34] : memref<2x128x128xbf16, #tpu.memory_space<vmem>>, vector<1x128x128xbf16>
    %47 = vector.shape_cast %46 : vector<1x128x128xbf16> to vector<128x128xbf16>
    %48 = arith.extf %47 : vector<128x128xbf16> to vector<128x128xf32>
    %49 = arith.mulf %48, %48 : vector<128x128xf32>
    %cst_35 = arith.constant 1.000000e+00 : f32
    %50 = vector.broadcast %cst_35 : f32 to vector<128x128xf32>
    %51 = arith.subf %50, %49 : vector<128x128xf32>
    %52 = arith.mulf %45, %51 : vector<128x128xf32>
    %53 = arith.truncf %52 : vector<128x128xf32> to vector<128x128xbf16>
    %c0_36 = arith.constant 0 : index
    %c0_37 = arith.constant 0 : index
    %c0_38 = arith.constant 0 : index
    %54 = vector.load %arg4[%c0_36, %c0_37, %c0_38] : memref<2x128x128xbf16, #tpu.memory_space<vmem>>, vector<1x128x128xbf16>
    %55 = vector.shape_cast %54 : vector<1x128x128xbf16> to vector<128x128xbf16>
    %cst_39 = arith.constant dense<0.000000e+00> : vector<128x128xf32>
    %56 = tpu.matmul %53, %55, %cst_39 {dimension_numbers = #tpu.dot_dimension_numbers<[1], [0], [0], [1], [0, 0, 1, 1], [], []>} : vector<128x128xbf16>, vector<128x128xbf16>, vector<128x128xf32> -> vector<128x128xf32>
    %57 = arith.addf %45, %56 : vector<128x128xf32>
    %58 = arith.truncf %57 : vector<128x128xf32> to vector<128x128xbf16>
    %c0_40 = arith.constant 0 : index
    %c0_41 = arith.constant 0 : index
    %59 = vector.load %arg7[%c0_40, %c0_41] : memref<128x128xbf16, #tpu.memory_space<vmem>>, vector<128x128xbf16>
    %cst_42 = arith.constant dense<0.000000e+00> : vector<128x128xf32>
    %60 = tpu.matmul %58, %59, %cst_42 {dimension_numbers = #tpu.dot_dimension_numbers<[1], [0], [0], [1], [0, 0, 1, 1], [], []>} : vector<128x128xbf16>, vector<128x128xbf16>, vector<128x128xf32> -> vector<128x128xf32>
    %c0_43 = arith.constant 0 : index
    %c0_44 = arith.constant 0 : index
    %61 = vector.load %arg8[%c0_43, %c0_44] : memref<128x128xf32, #tpu.memory_space<vmem>>, vector<128x128xf32>
    tpu.vector_store %arg8[%c0_43, %c0_44], %60 {strides = array<i32>} : memref<128x128xf32, #tpu.memory_space<vmem>>, vector<128x128xf32>,
    return
  }
  func.func @transform_0(%arg0: i32) -> (i32, i32) {
    %c0_i32 = arith.constant 0 : i32
    %c0_i32_0 = arith.constant 0 : i32
    return %arg0, %c0_i32 : i32, i32
  }
  func.func @transform_1(%arg0: i32) -> (i32, i32) {
    %c0_i32 = arith.constant 0 : i32
    %c0_i32_0 = arith.constant 0 : i32
    %c0_i32_1 = arith.constant 0 : i32
    return %c0_i32, %c0_i32_0 : i32, i32
  }
  func.func @transform_2(%arg0: i32) -> (i32, i32, i32) {
    %c0_i32 = arith.constant 0 : i32
    %c0_i32_0 = arith.constant 0 : i32
    %c0_i32_1 = arith.constant 0 : i32
    %c0_i32_2 = arith.constant 0 : i32
    return %c0_i32, %c0_i32_0, %c0_i32_1 : i32, i32, i32
  }
  func.func @transform_3(%arg0: i32) -> (i32, i32, i32) {
    %c0_i32 = arith.constant 0 : i32
    %c0_i32_0 = arith.constant 0 : i32
    %c0_i32_1 = arith.constant 0 : i32
    %c0_i32_2 = arith.constant 0 : i32
    return %c0_i32, %c0_i32_0, %c0_i32_1 : i32, i32, i32
  }
  func.func @transform_4(%arg0: i32) -> (i32, i32, i32) {
    %c0_i32 = arith.constant 0 : i32
    %c0_i32_0 = arith.constant 0 : i32
    %c0_i32_1 = arith.constant 0 : i32
    %c0_i32_2 = arith.constant 0 : i32
    return %c0_i32, %c0_i32_0, %c0_i32_1 : i32, i32, i32
  }
  func.func @transform_5(%arg0: i32) -> (i32, i32) {
    %c0_i32 = arith.constant 0 : i32
    %c0_i32_0 = arith.constant 0 : i32
    %c0_i32_1 = arith.constant 0 : i32
    return %c0_i32, %c0_i32_0 : i32, i32
  }
  func.func @transform_6(%arg0: i32) -> (i32, i32) {
    %c0_i32 = arith.constant 0 : i32
    %c0_i32_0 = arith.constant 0 : i32
    %c0_i32_1 = arith.constant 0 : i32
    return %c0_i32, %c0_i32_0 : i32, i32
  }
  func.func @transform_7(%arg0: i32) -> (i32, i32) {
    %c0_i32 = arith.constant 0 : i32
    %c0_i32_0 = arith.constant 0 : i32
    return %arg0, %c0_i32 : i32, i32
  }
}

</mosaic_0001>

<llo_original>
// kernel: tpu_custom_call.1
$region0: #{tpu_custom_call.1}
  #allocation0 [shape = 'u32[]', space=smem, size = 0x4, offset = 0x4, fixed_abs, tag = 'smem constant byte address 0x4 - core index']
  #allocation1 [shape = 'u32[72,128]{1,0:T(1,128)}', space=vmem, size = 0x9000, scoped, tag = 'internal scratch']
  #allocation2 [shape = 'bf16[2,128,128]{2,1,0:T(8,128)(2,1)}', space=vmem, size = 0x10000, scoped, tag = 'scratch operand']
  %s0 = inlined_call_operand.vmem [shape: f32[512,8], index: 0, kind: input, shape index: {}]
  %s1 = inlined_call_operand.vmem [shape: bf16[8,128], index: 1, kind: input, shape index: {}]
  %s2 = inlined_call_operand.vmem [shape: bf16[2,128,128], index: 2, kind: input, shape index: {}]
  %s3 = inlined_call_operand.vmem [shape: bf16[2,128,128], index: 3, kind: input, shape index: {}]
  %s4 = inlined_call_operand.vmem [shape: f32[2,1,128], index: 4, kind: input, shape index: {}]
  %s5 = inlined_call_operand.vmem [shape: f32[1,128], index: 5, kind: input, shape index: {}]
  %s6 = inlined_call_operand.vmem [shape: bf16[128,128], index: 6, kind: input, shape index: {}]
  %s7 = inlined_call_operand.hbm [shape: f32[512,128], index: 7, kind: output, shape index: {}]
  %s8 = sld [smem:[#allocation0]]
  $region61: #{tpu_custom_call.1} parent=0
    _
  %s10 = ssub.s32 1, %s8
  %s11 = scalar_select 0, %s10, %s8
  $region1: #{tpu_custom_call.1} parent=0
    #allocation3 [shape = 'u8[131072]{0}', space=vmem, size = 0x20000, scoped, tag = 'output window, operand 0']
    #allocation4 [shape = 's32[2]{0}', space=sflag, size = 0x8, scoped, tag = 'scoped memory for tpu_custom_call.1']
    %12 = vsyncpa [#allocation4], 0
    %s13 = scalar_lea.sflag [#allocation4], 1
    %14 = vsyncpa %s13, 0
    loop: start=0, step=1, limit=6
    $region2: #{tpu_custom_call.1} parent=1 // loop_pre_header
      _
    $region3: #{tpu_custom_call.1} parent=1 // loop_header
      %s16 = sphi 0, %s20
      %p17 = scmp.ge.s32.totalorder %s16, 6
      %s26 = sphi 0, %s28
      %s29 = sphi 0, %s26
      %s30 = sphi 0, %s29
      %s46 = sphi 0, %s30
      %s50 = sphi 0, %s50
      %s52 = sphi 0, %s50
      %s53 = sphi 0, %s52
      %s67 = sphi 0, %s53
      %s71 = sphi 0, %s71
      %s73 = sphi 0, %s71
      %s74 = sphi 0, %s73
      %s88 = sphi 0, %s74
      %s92 = sphi 0, %s92
      %s94 = sphi 0, %s92
      %s95 = sphi 0, %s94
      %s109 = sphi 0, %s95
      %s113 = sphi 0, %s113
      %s115 = sphi 0, %s113
      %s116 = sphi 0, %s115
      %s130 = sphi 0, %s116
      %s134 = sphi 0, %s134
      %s136 = sphi 0, %s134
      %s137 = sphi 0, %s136
      %s151 = sphi 0, %s137
      %s155 = sphi 0, %s155
      %s157 = sphi 0, %s155
      %s158 = sphi 0, %s157
      %s172 = sphi 0, %s158
      %s178 = sphi 0, %s180
      %s181 = sphi 0, %s178
      %s182 = sphi 0, %s181
      %s198 = sphi 0, %s182
    $region4: #{tpu_custom_call.1} parent=1 // loop_header_branch
      %19 = sbr.rel (%p17) target = $region8
    $region5: #{tpu_custom_call.1} parent=1 // loop_body
      %s21 = ssub.s32 %s16, 1
      %s22 = ssub.s32 %s16, 2
      %s23 = sadd.s32 %s16, 1
      %s24 = ssub.s32 %s16, %s23
      %p25 = scmp.eq.s32.totalorder %s24, 0
      %s27 = sadd.s32 %s26, 1
      %s28 = scalar_select %p25, %s26, %s27
      %p31 = pneg %p25
      %p32 = scmp.eq.s32.totalorder %s16, 3
      %p33 = por %p31, %p32
      %p34 = scmp.ne.s32.totalorder %s26, %s29
      %p35 = scmp.eq.s32.totalorder %s16, 0
      %p36 = por %p34, %p35
      %p37 = scmp.ne.s32.totalorder %s26, %s29
      %p38 = scmp.eq.s32.totalorder %s21, 3
      %p39 = por %p37, %p38
      %p40 = scmp.ne.s32.totalorder %s29, %s30
      %p41 = scmp.eq.s32.totalorder %s21, 0
      %p42 = por %p40, %p41
      %p43 = scmp.ne.s32.totalorder %s29, %s30
      %p44 = scmp.eq.s32.totalorder %s22, 3
      %p45 = por %p43, %p44
      %p47 = scmp.ne.s32.totalorder %s30, %s46
      %p48 = scmp.eq.s32.totalorder %s22, 0
      %p49 = por %p47, %p48
      %s51 = sadd.s32 %s50, 1
      %p54 = scmp.eq.s32.totalorder %s16, 3
      %p55 = scmp.ne.s32.totalorder %s50, %s52
      %p56 = scmp.eq.s32.totalorder %s16, 0
      %p57 = por %p55, %p56
      %p58 = scmp.ne.s32.totalorder %s50, %s52
      %p59 = scmp.eq.s32.totalorder %s21, 3
      %p60 = por %p58, %p59
      %p61 = scmp.ne.s32.totalorder %s52, %s53
      %p62 = scmp.eq.s32.totalorder %s21, 0
      %p63 = por %p61, %p62
      %p64 = scmp.ne.s32.totalorder %s52, %s53
      %p65 = scmp.eq.s32.totalorder %s22, 3
      %p66 = por %p64, %p65
      %p68 = scmp.ne.s32.totalorder %s53, %s67
      %p69 = scmp.eq.s32.totalorder %s22, 0
      %p70 = por %p68, %p69
      %s72 = sadd.s32 %s71, 1
      %p75 = scmp.eq.s32.totalorder %s16, 3
      %p76 = scmp.ne.s32.totalorder %s71, %s73
      %p77 = scmp.eq.s32.totalorder %s16, 0
      %p78 = por %p76, %p77
      %p79 = scmp.ne.s32.totalorder %s71, %s73
      %p80 = scmp.eq.s32.totalorder %s21, 3
      %p81 = por %p79, %p80
      %p82 = scmp.ne.s32.totalorder %s73, %s74
      %p83 = scmp.eq.s32.totalorder %s21, 0
      %p84 = por %p82, %p83
      %p85 = scmp.ne.s32.totalorder %s73, %s74
      %p86 = scmp.eq.s32.totalorder %s22, 3
      %p87 = por %p85, %p86
      %p89 = scmp.ne.s32.totalorder %s74, %s88
      %p90 = scmp.eq.s32.totalorder %s22, 0
      %p91 = por %p89, %p90
      %s93 = sadd.s32 %s92, 1
      %p96 = scmp.eq.s32.totalorder %s16, 3
      %p97 = scmp.ne.s32.totalorder %s92, %s94
      %p98 = scmp.eq.s32.totalorder %s16, 0
      %p99 = por %p97, %p98
      %p100 = scmp.ne.s32.totalorder %s92, %s94
      %p101 = scmp.eq.s32.totalorder %s21, 3
      %p102 = por %p100, %p101
      %p103 = scmp.ne.s32.totalorder %s94, %s95
      %p104 = scmp.eq.s32.totalorder %s21, 0
      %p105 = por %p103, %p104
      %p106 = scmp.ne.s32.totalorder %s94, %s95
      %p107 = scmp.eq.s32.totalorder %s22, 3
      %p108 = por %p106, %p107
      %p110 = scmp.ne.s32.totalorder %s95, %s109
      %p111 = scmp.eq.s32.totalorder %s22, 0
      %p112 = por %p110, %p111
      %s114 = sadd.s32 %s113, 1
      %p117 = scmp.eq.s32.totalorder %s16, 3
      %p118 = scmp.ne.s32.totalorder %s113, %s115
      %p119 = scmp.eq.s32.totalorder %s16, 0
      %p120 = por %p118, %p119
      %p121 = scmp.ne.s32.totalorder %s113, %s115
      %p122 = scmp.eq.s32.totalorder %s21, 3
      %p123 = por %p121, %p122
      %p124 = scmp.ne.s32.totalorder %s115, %s116
      %p125 = scmp.eq.s32.totalorder %s21, 0
      %p126 = por %p124, %p125
      %p127 = scmp.ne.s32.totalorder %s115, %s116
      %p128 = scmp.eq.s32.totalorder %s22, 3
      %p129 = por %p127, %p128
      %p131 = scmp.ne.s32.totalorder %s116, %s130
      %p132 = scmp.eq.s32.totalorder %s22, 0
      %p133 = por %p131, %p132
      %s135 = sadd.s32 %s134, 1
      %p138 = scmp.eq.s32.totalorder %s16, 3
      %p139 = scmp.ne.s32.totalorder %s134, %s136
      %p140 = scmp.eq.s32.totalorder %s16, 0
      %p141 = por %p139, %p140
      %p142 = scmp.ne.s32.totalorder %s134, %s136
      %p143 = scmp.eq.s32.totalorder %s21, 3
      %p144 = por %p142, %p143
      %p145 = scmp.ne.s32.totalorder %s136, %s137
      %p146 = scmp.eq.s32.totalorder %s21, 0
      %p147 = por %p145, %p146
      %p148 = scmp.ne.s32.totalorder %s136, %s137
      %p149 = scmp.eq.s32.totalorder %s22, 3
      %p150 = por %p148, %p149
      %p152 = scmp.ne.s32.totalorder %s137, %s151
      %p153 = scmp.eq.s32.totalorder %s22, 0
      %p154 = por %p152, %p153
      %s156 = sadd.s32 %s155, 1
      %p159 = scmp.eq.s32.totalorder %s16, 3
      %p160 = scmp.ne.s32.totalorder %s155, %s157
      %p161 = scmp.eq.s32.totalorder %s16, 0
      %p162 = por %p160, %p161
      %p163 = scmp.ne.s32.totalorder %s155, %s157
      %p164 = scmp.eq.s32.totalorder %s21, 3
      %p165 = por %p163, %p164
      %p166 = scmp.ne.s32.totalorder %s157, %s158
      %p167 = scmp.eq.s32.totalorder %s21, 0
      %p168 = por %p166, %p167
      %p169 = scmp.ne.s32.totalorder %s157, %s158
      %p170 = scmp.eq.s32.totalorder %s22, 3
      %p171 = por %p169, %p170
      %p173 = scmp.ne.s32.totalorder %s158, %s172
      %p174 = scmp.eq.s32.totalorder %s22, 0
      %p175 = por %p173, %p174
      %s176 = ssub.s32 %s16, %s23
      %p177 = scmp.eq.s32.totalorder %s176, 0
      %s179 = sadd.s32 %s178, 1
      %s180 = scalar_select %p177, %s178, %s179
      %p183 = pneg %p177
      %p184 = scmp.eq.s32.totalorder %s16, 3
      %p185 = por %p183, %p184
      %p186 = scmp.ne.s32.totalorder %s178, %s181
      %p187 = scmp.eq.s32.totalorder %s16, 0
      %p188 = por %p186, %p187
      %p189 = scmp.ne.s32.totalorder %s178, %s181
      %p190 = scmp.eq.s32.totalorder %s21, 3
      %p191 = por %p189, %p190
      %p192 = scmp.ne.s32.totalorder %s181, %s182
      %p193 = scmp.eq.s32.totalorder %s21, 0
      %p194 = por %p192, %p193
      %p195 = scmp.ne.s32.totalorder %s181, %s182
      %p196 = scmp.eq.s32.totalorder %s22, 3
      %p197 = por %p195, %p196
      %p199 = scmp.ne.s32.totalorder %s182, %s198
      %p200 = scmp.eq.s32.totalorder %s22, 0
      %p201 = por %p199, %p200
      %p202 = scmp.le.s32.totalorder 1, %s16
      %p203 = scmp.lt.s32.totalorder %s16, 5
      %p204 = pnand %p202, %p203
      %p205 = pneg %p204
      // Predicated region
      $region9: #{tpu_custom_call.1} parent=5 // pred_check
        _
      $region10: #{tpu_custom_call.1} parent=5 // pred_check_branch
        %207 = sbr.rel (%p204) target = $region12
      $region11: #{tpu_custom_call.1} parent=5 // pred_region
        %s208 = ssub.s32 %s16, 1
        // Predicated region
        $region13: #{tpu_custom_call.1} parent=11 // pred_check
          %p209 = pneg %p63
        $region14: #{tpu_custom_call.1} parent=11 // pred_check_branch
          %211 = sbr.rel (%p209) target = $region16
        $region15: #{tpu_custom_call.1} parent=11 // pred_region
          _
        $region16: #{tpu_custom_call.1} parent=11 // pred_fallthru
          _
        // Predicated region
        $region17: #{tpu_custom_call.1} parent=11 // pred_check
          %p212 = pneg %p84
        $region18: #{tpu_custom_call.1} parent=11 // pred_check_branch
          %214 = sbr.rel (%p212) target = $region20
        $region19: #{tpu_custom_call.1} parent=11 // pred_region
          _
        $region20: #{tpu_custom_call.1} parent=11 // pred_fallthru
          _
        // Predicated region
        $region21: #{tpu_custom_call.1} parent=11 // pred_check
          %p215 = pneg %p105
        $region22: #{tpu_custom_call.1} parent=11 // pred_check_branch
          %217 = sbr.rel (%p215) target = $region24
        $region23: #{tpu_custom_call.1} parent=11 // pred_region
          _
        $region24: #{tpu_custom_call.1} parent=11 // pred_fallthru
          _
        // Predicated region
        $region25: #{tpu_custom_call.1} parent=11 // pred_check
          %p218 = pneg %p126
        $region26: #{tpu_custom_call.1} parent=11 // pred_check_branch
          %220 = sbr.rel (%p218) target = $region28
        $region27: #{tpu_custom_call.1} parent=11 // pred_region
          _
        $region28: #{tpu_custom_call.1} parent=11 // pred_fallthru
          _
        // Predicated region
        $region29: #{tpu_custom_call.1} parent=11 // pred_check
          %p221 = pneg %p147
        $region30: #{tpu_custom_call.1} parent=11 // pred_check_branch
          %223 = sbr.rel (%p221) target = $region32
        $region31: #{tpu_custom_call.1} parent=11 // pred_region
          _
        $region32: #{tpu_custom_call.1} parent=11 // pred_fallthru
          _
        // Predicated region
        $region33: #{tpu_custom_call.1} parent=11 // pred_check
          %p224 = pneg %p168
        $region34: #{tpu_custom_call.1} parent=11 // pred_check_branch
          %226 = sbr.rel (%p224) target = $region36
        $region35: #{tpu_custom_call.1} parent=11 // pred_region
          _
        $region36: #{tpu_custom_call.1} parent=11 // pred_fallthru
          _
      $region12: #{tpu_custom_call.1} parent=5 // pred_fallthru
        _
      %p227 = scmp.lt.s32.totalorder %s16, 4
      // Predicated region
      $region37: #{tpu_custom_call.1} parent=5 // pred_check
        %p228 = pneg %p227
      $region38: #{tpu_custom_call.1} parent=5 // pred_check_branch
        %230 = sbr.rel (%p228) target = $region40
      $region39: #{tpu_custom_call.1} parent=5 // pred_region
        // Predicated region
        $region41: #{tpu_custom_call.1} parent=39 // pred_check
          %p231 = pneg %p36
        $region42: #{tpu_custom_call.1} parent=39 // pred_check_branch
          %233 = sbr.rel (%p231) target = $region44
        $region43: #{tpu_custom_call.1} parent=39 // pred_region
          %s234 = smul.u32 16, %s16
          %p235 = scmp.lt.s32.totalorder %s234, 63
          %s236 = scalar_select %p235, %s234, 63
          %s237 = smul.addr %s236, 8
          %s238 = scalar_lea.vmem %s0, %s237
          %s239 = smul.u32 16, %s16
        $region44: #{tpu_custom_call.1} parent=39 // pred_fallthru
          _
      $region40: #{tpu_custom_call.1} parent=5 // pred_fallthru
        _
      %p240 = scmp.le.s32.totalorder 1, %s16
      %p241 = scmp.lt.s32.totalorder %s16, 5
      %p242 = pnand %p240, %p241
      %p243 = pneg %p242
      // Predicated region
      $region45: #{tpu_custom_call.1} parent=5 // pred_check
        _
      $region46: #{tpu_custom_call.1} parent=5 // pred_check_branch
        %245 = sbr.rel (%p242) target = $region48
      $region47: #{tpu_custom_call.1} parent=5 // pred_region
        %s246 = ssub.s32 %s16, 1
        %s247 = smul.u32 16, %s21
        %p248 = scmp.lt.s32.totalorder %s247, 63
        %s249 = scalar_select %p248, %s247, 63
        %s250 = smul.addr %s249, 8
        %s251 = scalar_lea.vmem %s0, %s250
        %p252 = pneg %p42
        %p253 = pneg %p39
        %p254 = pneg %p63
        %p255 = pneg %p60
        %p256 = pneg %p84
        %p257 = pneg %p81
        %p258 = pneg %p105
        %p259 = pneg %p102
        %p260 = pneg %p126
        %p261 = pneg %p123
        %p262 = pneg %p147
        %p263 = pneg %p144
        %p264 = pneg %p168
        %p265 = pneg %p165
        %p266 = pneg %p194
        %p267 = pneg %p191
        %s268 = sand.u32 %s181, 1
        %s269 = scalar_lea.sflag [#allocation4], %s268
        %s270 = sand.u32 %s181, 1
        %s271 = smul.addr %s270, 128
        %s272 = scalar_lea.vmem [#allocation3], %s271
        %s273 = smul.u32 16, %s21
        %p274 = scmp.lt.s32.totalorder %s273, 63
        %s275 = scalar_select %p274, %s273, 63
        %s276 = smul.addr %s275, 8
        %s277 = scalar_lea.vmem %s0, %s276
        %s278 = smul.u32 16, %s21
        %s279 = smul.u32 16, %s21
        %v281 = vld [vmem:[%s277] sm:$0xff]
        %v282 = vld [vmem:[%s277 + $0x8] sm:$0xff]
        %v283 = vld [vmem:[%s277 + $0x10] sm:$0xff]
        %v284 = vld [vmem:[%s277 + $0x18] sm:$0xff]
        %v285 = vld [vmem:[%s277 + $0x20] sm:$0xff]
        %v286 = vld [vmem:[%s277 + $0x28] sm:$0xff]
        %v287 = vld [vmem:[%s277 + $0x30] sm:$0xff]
        %v288 = vld [vmem:[%s277 + $0x38] sm:$0xff]
        %v289 = vld [vmem:[%s277 + $0x40] sm:$0xff]
        %v290 = vld [vmem:[%s277 + $0x48] sm:$0xff]
        %v291 = vld [vmem:[%s277 + $0x50] sm:$0xff]
        %v292 = vld [vmem:[%s277 + $0x58] sm:$0xff]
        %v293 = vld [vmem:[%s277 + $0x60] sm:$0xff]
        %v294 = vld [vmem:[%s277 + $0x68] sm:$0xff]
        %v295 = vld [vmem:[%s277 + $0x70] sm:$0xff]
        %v296 = vld [vmem:[%s277 + $0x78] sm:$0xff]
        %v297 = vpack.c.bf16 %v282, %v281
        %v298 = vpack.c.bf16 %v284, %v283
        %v299 = vpack.c.bf16 %v286, %v285
        %v300 = vpack.c.bf16 %v288, %v287
        %v301 = vpack.c.bf16 %v290, %v289
        %v302 = vpack.c.bf16 %v292, %v291
        %v303 = vpack.c.bf16 %v294, %v293
        %v304 = vpack.c.bf16 %v296, %v295
        %v305 = vld [vmem:[%s1] sm:$0xf]
        %vm306 = vcmask 64512
        %v308 = vsel %vm306, %v297, 0
        %v311 = vsel %vm306, %v298, 0
        %v314 = vsel %vm306, %v299, 0
        %v317 = vsel %vm306, %v300, 0
        %v320 = vsel %vm306, %v301, 0
        %v323 = vsel %vm306, %v302, 0
        %v326 = vsel %vm306, %v303, 0
        %v329 = vsel %vm306, %v304, 0
        %vm331 = vcmask 1043456
        %v333 = vsel %vm331, %v305, 0
        %335 = vmatpush.bf16.msra.mxu0 0
        %336 = vmatpush.bf16.msra.mxu0 0
        %337 = vmatpush.bf16.msra.mxu0 0
        %338 = vmatpush.bf16.msra.mxu0 0
        %339 = vmatpush.bf16.msra.mxu0 0
        %340 = vmatpush.bf16.msra.mxu0 0
        %341 = vmatpush.bf16.msra.mxu0 0
        %342 = vmatpush.bf16.msra.mxu0 %v333
        %343 = vmatmul.bf16.gmra.mxu0 %v308
        %v344 = vpop.f32.mrf.mxu0
        %v345 = vadd.f32 0.0, %v344
        %v346 = vpop.f32.mrf.mxu0
        %v347 = vadd.f32 0.0, %v346
        %348 = vmatmul.bf16.gmra.mxu0 %v311
        %v349 = vpop.f32.mrf.mxu0
        %v350 = vadd.f32 0.0, %v349
        %v351 = vpop.f32.mrf.mxu0
        %v352 = vadd.f32 0.0, %v351
        %353 = vmatmul.bf16.gmra.mxu0 %v314
        %v354 = vpop.f32.mrf.mxu0
        %v355 = vadd.f32 0.0, %v354
        %v356 = vpop.f32.mrf.mxu0
        %v357 = vadd.f32 0.0, %v356
        %358 = vmatmul.bf16.gmra.mxu0 %v317
        %v359 = vpop.f32.mrf.mxu0
        %v360 = vadd.f32 0.0, %v359
        %v361 = vpop.f32.mrf.mxu0
        %v362 = vadd.f32 0.0, %v361
        %363 = vmatmul.bf16.gmra.mxu0 %v320
        %v364 = vpop.f32.mrf.mxu0
        %v365 = vadd.f32 0.0, %v364
        %v366 = vpop.f32.mrf.mxu0
        %v367 = vadd.f32 0.0, %v366
        %368 = vmatmul.bf16.gmra.mxu0 %v323
        %v369 = vpop.f32.mrf.mxu0
        %v370 = vadd.f32 0.0, %v369
        %v371 = vpop.f32.mrf.mxu0
        %v372 = vadd.f32 0.0, %v371
        %373 = vmatmul.bf16.gmra.mxu0 %v326
        %v374 = vpop.f32.mrf.mxu0
        %v375 = vadd.f32 0.0, %v374
        %v376 = vpop.f32.mrf.mxu0
        %v377 = vadd.f32 0.0, %v376
        %378 = vmatmul.bf16.gmra.mxu0 %v329
        %v379 = vpop.f32.mrf.mxu0
        %v380 = vadd.f32 0.0, %v379
        %v381 = vpop.f32.mrf.mxu0
        %v382 = vadd.f32 0.0, %v381
        %383 = vdwg.mxu0
        %v384 = vld [vmem:[%s5] sm:$0x1]
        %v386 = vperm.slane %v384, 0
        %v388 = vpack.c.bf16 %v347, %v345
        %v389 = vpack.c.bf16 %v352, %v350
        %v390 = vpack.c.bf16 %v357, %v355
        %v391 = vpack.c.bf16 %v362, %v360
        %v392 = vpack.c.bf16 %v367, %v365
        %v393 = vpack.c.bf16 %v372, %v370
        %v394 = vpack.c.bf16 %v377, %v375
        %v395 = vpack.c.bf16 %v382, %v380
        %v396 = vld [vmem:[%s2] sm:$0xf]
        %v397 = vld [vmem:[%s2 + $0x4] sm:$0xf]
        %v398 = vld [vmem:[%s2 + $0x8] sm:$0xf]
        %v399 = vld [vmem:[%s2 + $0xc] sm:$0xf]
        %v400 = vld [vmem:[%s2 + $0x10] sm:$0xf]
        %v401 = vld [vmem:[%s2 + $0x14] sm:$0xf]
        %v402 = vld [vmem:[%s2 + $0x18] sm:$0xf]
        %v403 = vld [vmem:[%s2 + $0x1c] sm:$0xf]
        %v404 = vld [vmem:[%s2 + $0x20] sm:$0xf]
        %v405 = vld [vmem:[%s2 + $0x24] sm:$0xf]
        %v406 = vld [vmem:[%s2 + $0x28] sm:$0xf]
        %v407 = vld [vmem:[%s2 + $0x2c] sm:$0xf]
        %v408 = vld [vmem:[%s2 + $0x30] sm:$0xf]
        %v409 = vld [vmem:[%s2 + $0x34] sm:$0xf]
        %v410 = vld [vmem:[%s2 + $0x38] sm:$0xf]
        %v411 = vld [vmem:[%s2 + $0x3c] sm:$0xf]
        %v412 = vld [vmem:[%s4] sm:$0x1]
        %v414 = vperm.slane %v412, 0
        %v432 = vunpack.c.l.b16 %v396
        %v433 = vunpack.c.l.b16 %v397
        %v434 = vunpack.c.l.b16 %v398
        %v435 = vunpack.c.l.b16 %v399
        %v436 = vunpack.c.l.b16 %v400
        %v437 = vunpack.c.l.b16 %v401
        %v438 = vunpack.c.l.b16 %v402
        %v439 = vunpack.c.l.b16 %v403
        %v440 = vunpack.c.l.b16 %v404
        %v441 = vunpack.c.l.b16 %v405
        %v442 = vunpack.c.l.b16 %v406
        %v443 = vunpack.c.l.b16 %v407
        %v444 = vunpack.c.l.b16 %v408
        %v445 = vunpack.c.l.b16 %v409
        %v446 = vunpack.c.l.b16 %v410
        %v447 = vunpack.c.l.b16 %v411
        %v448 = vpack.c.b16 %v433, %v432
        %v449 = vpack.c.b16 %v435, %v434
        %v450 = vpack.c.b16 %v437, %v436
        %v451 = vpack.c.b16 %v439, %v438
        %v452 = vpack.c.b16 %v441, %v440
        %v453 = vpack.c.b16 %v443, %v442
        %v454 = vpack.c.b16 %v445, %v444
        %v455 = vpack.c.b16 %v447, %v446
        %464 = vmatpush.bf16.msra.mxu0 %v455
        %465 = vmatpush.bf16.msra.mxu0 %v454
        %466 = vmatpush.bf16.msra.mxu0 %v453
        %467 = vmatpush.bf16.msra.mxu0 %v452
        %468 = vmatpush.bf16.msra.mxu0 %v451
        %469 = vmatpush.bf16.msra.mxu0 %v450
        %470 = vmatpush.bf16.msra.mxu0 %v449
        %471 = vmatpush.bf16.msra.mxu0 %v448
        %472 = vmatmul.bf16.gmra.mxu0 %v388
        %v473 = vpop.f32.mrf.mxu0
        %v474 = vadd.f32 %v414, %v473
        %v475 = vpop.f32.mrf.mxu0
        %v476 = vadd.f32 %v414, %v475
        %477 = vmatmul.bf16.gmra.mxu0 %v389
        %v478 = vpop.f32.mrf.mxu0
        %v479 = vadd.f32 %v414, %v478
        %v480 = vpop.f32.mrf.mxu0
        %v481 = vadd.f32 %v414, %v480
        %482 = vmatmul.bf16.gmra.mxu0 %v390
        %v483 = vpop.f32.mrf.mxu0
        %v484 = vadd.f32 %v414, %v483
        %v485 = vpop.f32.mrf.mxu0
        %v486 = vadd.f32 %v414, %v485
        %487 = vmatmul.bf16.gmra.mxu0 %v391
        %v488 = vpop.f32.mrf.mxu0
        %v489 = vadd.f32 %v414, %v488
        %v490 = vpop.f32.mrf.mxu0
        %v491 = vadd.f32 %v414, %v490
        %492 = vmatmul.bf16.gmra.mxu0 %v392
        %v493 = vpop.f32.mrf.mxu0
        %v494 = vadd.f32 %v414, %v493
        %v495 = vpop.f32.mrf.mxu0
        %v496 = vadd.f32 %v414, %v495
        %497 = vmatmul.bf16.gmra.mxu0 %v393
        %v498 = vpop.f32.mrf.mxu0
        %v499 = vadd.f32 %v414, %v498
        %v500 = vpop.f32.mrf.mxu0
        %v501 = vadd.f32 %v414, %v500
        %502 = vmatmul.bf16.gmra.mxu0 %v394
        %v503 = vpop.f32.mrf.mxu0
        %v504 = vadd.f32 %v414, %v503
        %v505 = vpop.f32.mrf.mxu0
        %v506 = vadd.f32 %v414, %v505
        %507 = vmatmul.bf16.gmra.mxu0 %v395
        %v508 = vpop.f32.mrf.mxu0
        %v509 = vadd.f32 %v414, %v508
        %v510 = vpop.f32.mrf.mxu0
        %v511 = vadd.f32 %v414, %v510
        %512 = vdwg.mxu0
        %v513 = vtanh.pop %v474
        %v514 = vtanh.pop %v476
        %v515 = vtanh.pop %v479
        %v516 = vtanh.pop %v481
        %v517 = vtanh.pop %v484
        %v518 = vtanh.pop %v486
        %v519 = vtanh.pop %v489
        %v520 = vtanh.pop %v491
        %v521 = vtanh.pop %v494
        %v522 = vtanh.pop %v496
        %v523 = vtanh.pop %v499
        %v524 = vtanh.pop %v501
        %v525 = vtanh.pop %v504
        %v526 = vtanh.pop %v506
        %v527 = vtanh.pop %v509
        %v528 = vtanh.pop %v511
        %v529 = vpack.c.bf16 %v513, %v513
        %v530 = vpack.c.bf16 %v514, %v514
        %v531 = vpack.c.bf16 %v515, %v515
        %v532 = vpack.c.bf16 %v516, %v516
        %v533 = vpack.c.bf16 %v517, %v517
        %v534 = vpack.c.bf16 %v518, %v518
        %v535 = vpack.c.bf16 %v519, %v519
        %v536 = vpack.c.bf16 %v520, %v520
        %v537 = vpack.c.bf16 %v521, %v521
        %v538 = vpack.c.bf16 %v522, %v522
        %v539 = vpack.c.bf16 %v523, %v523
        %v540 = vpack.c.bf16 %v524, %v524
        %v541 = vpack.c.bf16 %v525, %v525
        %v542 = vpack.c.bf16 %v526, %v526
        %v543 = vpack.c.bf16 %v527, %v527
        %v544 = vpack.c.bf16 %v528, %v528
        %545 = vst [vmem:[#allocation2] sm:$0xf] %v529
        %546 = vst [vmem:[#allocation2 + $0x4] sm:$0xf] %v530
        %547 = vst [vmem:[#allocation2 + $0x8] sm:$0xf] %v531
        %548 = vst [vmem:[#allocation2 + $0xc] sm:$0xf] %v532
        %549 = vst [vmem:[#allocation2 + $0x10] sm:$0xf] %v533
        %550 = vst [vmem:[#allocation2 + $0x14] sm:$0xf] %v534
        %551 = vst [vmem:[#allocation2 + $0x18] sm:$0xf] %v535
        %552 = vst [vmem:[#allocation2 + $0x1c] sm:$0xf] %v536
        %553 = vst [vmem:[#allocation2 + $0x20] sm:$0xf] %v537
        %554 = vst [vmem:[#allocation2 + $0x24] sm:$0xf] %v538
        %555 = vst [vmem:[#allocation2 + $0x28] sm:$0xf] %v539
        %556 = vst [vmem:[#allocation2 + $0x2c] sm:$0xf] %v540
        %557 = vst [vmem:[#allocation2 + $0x30] sm:$0xf] %v541
        %558 = vst [vmem:[#allocation2 + $0x34] sm:$0xf] %v542
        %559 = vst [vmem:[#allocation2 + $0x38] sm:$0xf] %v543
        %560 = vst [vmem:[#allocation2 + $0x3c] sm:$0xf] %v544
        %v561 = vadd.f32 %v345, %v513
        %v562 = vadd.f32 %v347, %v514
        %v563 = vadd.f32 %v350, %v515
        %v564 = vadd.f32 %v352, %v516
        %v565 = vadd.f32 %v355, %v517
        %v566 = vadd.f32 %v357, %v518
        %v567 = vadd.f32 %v360, %v519
        %v568 = vadd.f32 %v362, %v520
        %v569 = vadd.f32 %v365, %v521
        %v570 = vadd.f32 %v367, %v522
        %v571 = vadd.f32 %v370, %v523
        %v572 = vadd.f32 %v372, %v524
        %v573 = vadd.f32 %v375, %v525
        %v574 = vadd.f32 %v377, %v526
        %v575 = vadd.f32 %v380, %v527
        %v576 = vadd.f32 %v382, %v528
        %v577 = vpack.c.bf16 %v562, %v561
        %v578 = vpack.c.bf16 %v564, %v563
        %v579 = vpack.c.bf16 %v566, %v565
        %v580 = vpack.c.bf16 %v568, %v567
        %v581 = vpack.c.bf16 %v570, %v569
        %v582 = vpack.c.bf16 %v572, %v571
        %v583 = vpack.c.bf16 %v574, %v573
        %v584 = vpack.c.bf16 %v576, %v575
        %s585 = scalar_lea.vmem %s2, 64
        %v586 = vld [vmem:[%s585] sm:$0xf]
        %v587 = vld [vmem:[%s585 + $0x4] sm:$0xf]
        %v588 = vld [vmem:[%s585 + $0x8] sm:$0xf]
        %v589 = vld [vmem:[%s585 + $0xc] sm:$0xf]
        %v590 = vld [vmem:[%s585 + $0x10] sm:$0xf]
        %v591 = vld [vmem:[%s585 + $0x14] sm:$0xf]
        %v592 = vld [vmem:[%s585 + $0x18] sm:$0xf]
        %v593 = vld [vmem:[%s585 + $0x1c] sm:$0xf]
        %v594 = vld [vmem:[%s585 + $0x20] sm:$0xf]
        %v595 = vld [vmem:[%s585 + $0x24] sm:$0xf]
        %v596 = vld [vmem:[%s585 + $0x28] sm:$0xf]
        %v597 = vld [vmem:[%s585 + $0x2c] sm:$0xf]
        %v598 = vld [vmem:[%s585 + $0x30] sm:$0xf]
        %v599 = vld [vmem:[%s585 + $0x34] sm:$0xf]
        %v600 = vld [vmem:[%s585 + $0x38] sm:$0xf]
        %v601 = vld [vmem:[%s585 + $0x3c] sm:$0xf]
        %s602 = scalar_lea.vmem %s4, 1
        %v603 = vld [vmem:[%s602] sm:$0x1]
        %v605 = vperm.slane %v603, 0
        %v623 = vunpack.c.l.b16 %v586
        %v624 = vunpack.c.l.b16 %v587
        %v625 = vunpack.c.l.b16 %v588
        %v626 = vunpack.c.l.b16 %v589
        %v627 = vunpack.c.l.b16 %v590
        %v628 = vunpack.c.l.b16 %v591
        %v629 = vunpack.c.l.b16 %v592
        %v630 = vunpack.c.l.b16 %v593
        %v631 = vunpack.c.l.b16 %v594
        %v632 = vunpack.c.l.b16 %v595
        %v633 = vunpack.c.l.b16 %v596
        %v634 = vunpack.c.l.b16 %v597
        %v635 = vunpack.c.l.b16 %v598
        %v636 = vunpack.c.l.b16 %v599
        %v637 = vunpack.c.l.b16 %v600
        %v638 = vunpack.c.l.b16 %v601
        %v639 = vpack.c.b16 %v624, %v623
        %v640 = vpack.c.b16 %v626, %v625
        %v641 = vpack.c.b16 %v628, %v627
        %v642 = vpack.c.b16 %v630, %v629
        %v643 = vpack.c.b16 %v632, %v631
        %v644 = vpack.c.b16 %v634, %v633
        %v645 = vpack.c.b16 %v636, %v635
        %v646 = vpack.c.b16 %v638, %v637
        %655 = vmatpush.bf16.msra.mxu0 %v646
        %656 = vmatpush.bf16.msra.mxu0 %v645
        %657 = vmatpush.bf16.msra.mxu0 %v644
        %658 = vmatpush.bf16.msra.mxu0 %v643
        %659 = vmatpush.bf16.msra.mxu0 %v642
        %660 = vmatpush.bf16.msra.mxu0 %v641
        %661 = vmatpush.bf16.msra.mxu0 %v640
        %662 = vmatpush.bf16.msra.mxu0 %v639
        %663 = vmatmul.bf16.gmra.mxu0 %v577
        %v664 = vpop.f32.mrf.mxu0
        %v665 = vadd.f32 %v605, %v664
        %v666 = vpop.f32.mrf.mxu0
        %v667 = vadd.f32 %v605, %v666
        %668 = vmatmul.bf16.gmra.mxu0 %v578
        %v669 = vpop.f32.mrf.mxu0
        %v670 = vadd.f32 %v605, %v669
        %v671 = vpop.f32.mrf.mxu0
        %v672 = vadd.f32 %v605, %v671
        %673 = vmatmul.bf16.gmra.mxu0 %v579
        %v674 = vpop.f32.mrf.mxu0
        %v675 = vadd.f32 %v605, %v674
        %v676 = vpop.f32.mrf.mxu0
        %v677 = vadd.f32 %v605, %v676
        %678 = vmatmul.bf16.gmra.mxu0 %v580
        %v679 = vpop.f32.mrf.mxu0
        %v680 = vadd.f32 %v605, %v679
        %v681 = vpop.f32.mrf.mxu0
        %v682 = vadd.f32 %v605, %v681
        %683 = vmatmul.bf16.gmra.mxu0 %v581
        %v684 = vpop.f32.mrf.mxu0
        %v685 = vadd.f32 %v605, %v684
        %v686 = vpop.f32.mrf.mxu0
        %v687 = vadd.f32 %v605, %v686
        %688 = vmatmul.bf16.gmra.mxu0 %v582
        %v689 = vpop.f32.mrf.mxu0
        %v690 = vadd.f32 %v605, %v689
        %v691 = vpop.f32.mrf.mxu0
        %v692 = vadd.f32 %v605, %v691
        %693 = vmatmul.bf16.gmra.mxu0 %v583
        %v694 = vpop.f32.mrf.mxu0
        %v695 = vadd.f32 %v605, %v694
        %v696 = vpop.f32.mrf.mxu0
        %v697 = vadd.f32 %v605, %v696
        %698 = vmatmul.bf16.gmra.mxu0 %v584
        %v699 = vpop.f32.mrf.mxu0
        %v700 = vadd.f32 %v605, %v699
        %v701 = vpop.f32.mrf.mxu0
        %v702 = vadd.f32 %v605, %v701
        %703 = vdwg.mxu0
        %v704 = vtanh.pop %v665
        %v705 = vtanh.pop %v667
        %v706 = vtanh.pop %v670
        %v707 = vtanh.pop %v672
        %v708 = vtanh.pop %v675
        %v709 = vtanh.pop %v677
        %v710 = vtanh.pop %v680
        %v711 = vtanh.pop %v682
        %v712 = vtanh.pop %v685
        %v713 = vtanh.pop %v687
        %v714 = vtanh.pop %v690
        %v715 = vtanh.pop %v692
        %v716 = vtanh.pop %v695
        %v717 = vtanh.pop %v697
        %v718 = vtanh.pop %v700
        %v719 = vtanh.pop %v702
        %v720 = vpack.c.bf16 %v704, %v704
        %v721 = vpack.c.bf16 %v705, %v705
        %v722 = vpack.c.bf16 %v706, %v706
        %v723 = vpack.c.bf16 %v707, %v707
        %v724 = vpack.c.bf16 %v708, %v708
        %v725 = vpack.c.bf16 %v709, %v709
        %v726 = vpack.c.bf16 %v710, %v710
        %v727 = vpack.c.bf16 %v711, %v711
        %v728 = vpack.c.bf16 %v712, %v712
        %v729 = vpack.c.bf16 %v713, %v713
        %v730 = vpack.c.bf16 %v714, %v714
        %v731 = vpack.c.bf16 %v715, %v715
        %v732 = vpack.c.bf16 %v716, %v716
        %v733 = vpack.c.bf16 %v717, %v717
        %v734 = vpack.c.bf16 %v718, %v718
        %v735 = vpack.c.bf16 %v719, %v719
        %s736 = scalar_lea.vmem [#allocation2], 64
        %737 = vst [vmem:[%s736] sm:$0xf] %v720
        %738 = vst [vmem:[%s736 + $0x4] sm:$0xf] %v721
        %739 = vst [vmem:[%s736 + $0x8] sm:$0xf] %v722
        %740 = vst [vmem:[%s736 + $0xc] sm:$0xf] %v723
        %741 = vst [vmem:[%s736 + $0x10] sm:$0xf] %v724
        %742 = vst [vmem:[%s736 + $0x14] sm:$0xf] %v725
        %743 = vst [vmem:[%s736 + $0x18] sm:$0xf] %v726
        %744 = vst [vmem:[%s736 + $0x1c] sm:$0xf] %v727
        %745 = vst [vmem:[%s736 + $0x20] sm:$0xf] %v728
        %746 = vst [vmem:[%s736 + $0x24] sm:$0xf] %v729
        %747 = vst [vmem:[%s736 + $0x28] sm:$0xf] %v730
        %748 = vst [vmem:[%s736 + $0x2c] sm:$0xf] %v731
        %749 = vst [vmem:[%s736 + $0x30] sm:$0xf] %v732
        %750 = vst [vmem:[%s736 + $0x34] sm:$0xf] %v733
        %751 = vst [vmem:[%s736 + $0x38] sm:$0xf] %v734
        %752 = vst [vmem:[%s736 + $0x3c] sm:$0xf] %v735
        %v753 = vld [vmem:[%s736] sm:$0xf]
        %v754 = vld [vmem:[%s736 + $0x4] sm:$0xf]
        %v755 = vld [vmem:[%s736 + $0x8] sm:$0xf]
        %v756 = vld [vmem:[%s736 + $0xc] sm:$0xf]
        %v757 = vld [vmem:[%s736 + $0x10] sm:$0xf]
        %v758 = vld [vmem:[%s736 + $0x14] sm:$0xf]
        %v759 = vld [vmem:[%s736 + $0x18] sm:$0xf]
        %v760 = vld [vmem:[%s736 + $0x1c] sm:$0xf]
        %v761 = vld [vmem:[%s736 + $0x20] sm:$0xf]
        %v762 = vld [vmem:[%s736 + $0x24] sm:$0xf]
        %v763 = vld [vmem:[%s736 + $0x28] sm:$0xf]
        %v764 = vld [vmem:[%s736 + $0x2c] sm:$0xf]
        %v765 = vld [vmem:[%s736 + $0x30] sm:$0xf]
        %v766 = vld [vmem:[%s736 + $0x34] sm:$0xf]
        %v767 = vld [vmem:[%s736 + $0x38] sm:$0xf]
        %v768 = vld [vmem:[%s736 + $0x3c] sm:$0xf]
        %v769 = vunpack.c.l.bf16 %v753
        %v770 = vunpack.c.l.bf16 %v754
        %v771 = vunpack.c.l.bf16 %v755
        %v772 = vunpack.c.l.bf16 %v756
        %v773 = vunpack.c.l.bf16 %v757
        %v774 = vunpack.c.l.bf16 %v758
        %v775 = vunpack.c.l.bf16 %v759
        %v776 = vunpack.c.l.bf16 %v760
        %v777 = vunpack.c.l.bf16 %v761
        %v778 = vunpack.c.l.bf16 %v762
        %v779 = vunpack.c.l.bf16 %v763
        %v780 = vunpack.c.l.bf16 %v764
        %v781 = vunpack.c.l.bf16 %v765
        %v782 = vunpack.c.l.bf16 %v766
        %v783 = vunpack.c.l.bf16 %v767
        %v784 = vunpack.c.l.bf16 %v768
        %v785 = vmul.f32 %v769, %v769
        %v786 = vmul.f32 %v770, %v770
        %v787 = vmul.f32 %v771, %v771
        %v788 = vmul.f32 %v772, %v772
        %v789 = vmul.f32 %v773, %v773
        %v790 = vmul.f32 %v774, %v774
        %v791 = vmul.f32 %v775, %v775
        %v792 = vmul.f32 %v776, %v776
        %v793 = vmul.f32 %v777, %v777
        %v794 = vmul.f32 %v778, %v778
        %v795 = vmul.f32 %v779, %v779
        %v796 = vmul.f32 %v780, %v780
        %v797 = vmul.f32 %v781, %v781
        %v798 = vmul.f32 %v782, %v782
        %v799 = vmul.f32 %v783, %v783
        %v800 = vmul.f32 %v784, %v784
        %v801 = vsub.f32 1.0, %v785
        %v802 = vsub.f32 1.0, %v786
        %v803 = vsub.f32 1.0, %v787
        %v804 = vsub.f32 1.0, %v788
        %v805 = vsub.f32 1.0, %v789
        %v806 = vsub.f32 1.0, %v790
        %v807 = vsub.f32 1.0, %v791
        %v808 = vsub.f32 1.0, %v792
        %v809 = vsub.f32 1.0, %v793
        %v810 = vsub.f32 1.0, %v794
        %v811 = vsub.f32 1.0, %v795
        %v812 = vsub.f32 1.0, %v796
        %v813 = vsub.f32 1.0, %v797
        %v814 = vsub.f32 1.0, %v798
        %v815 = vsub.f32 1.0, %v799
        %v816 = vsub.f32 1.0, %v800
        %v817 = vmul.f32 %v386, %v801
        %v818 = vmul.f32 %v386, %v802
        %v819 = vmul.f32 %v386, %v803
        %v820 = vmul.f32 %v386, %v804
        %v821 = vmul.f32 %v386, %v805
        %v822 = vmul.f32 %v386, %v806
        %v823 = vmul.f32 %v386, %v807
        %v824 = vmul.f32 %v386, %v808
        %v825 = vmul.f32 %v386, %v809
        %v826 = vmul.f32 %v386, %v810
        %v827 = vmul.f32 %v386, %v811
        %v828 = vmul.f32 %v386, %v812
        %v829 = vmul.f32 %v386, %v813
        %v830 = vmul.f32 %v386, %v814
        %v831 = vmul.f32 %v386, %v815
        %v832 = vmul.f32 %v386, %v816
        %v833 = vpack.c.bf16 %v818, %v817
        %v834 = vpack.c.bf16 %v820, %v819
        %v835 = vpack.c.bf16 %v822, %v821
        %v836 = vpack.c.bf16 %v824, %v823
        %v837 = vpack.c.bf16 %v826, %v825
        %v838 = vpack.c.bf16 %v828, %v827
        %v839 = vpack.c.bf16 %v830, %v829
        %v840 = vpack.c.bf16 %v832, %v831
        %s841 = scalar_lea.vmem %s3, 64
        %v842 = vld [vmem:[%s841] sm:$0xf]
        %v843 = vld [vmem:[%s841 + $0x4] sm:$0xf]
        %v844 = vld [vmem:[%s841 + $0x8] sm:$0xf]
        %v845 = vld [vmem:[%s841 + $0xc] sm:$0xf]
        %v846 = vld [vmem:[%s841 + $0x10] sm:$0xf]
        %v847 = vld [vmem:[%s841 + $0x14] sm:$0xf]
        %v848 = vld [vmem:[%s841 + $0x18] sm:$0xf]
        %v849 = vld [vmem:[%s841 + $0x1c] sm:$0xf]
        %v850 = vld [vmem:[%s841 + $0x20] sm:$0xf]
        %v851 = vld [vmem:[%s841 + $0x24] sm:$0xf]
        %v852 = vld [vmem:[%s841 + $0x28] sm:$0xf]
        %v853 = vld [vmem:[%s841 + $0x2c] sm:$0xf]
        %v854 = vld [vmem:[%s841 + $0x30] sm:$0xf]
        %v855 = vld [vmem:[%s841 + $0x34] sm:$0xf]
        %v856 = vld [vmem:[%s841 + $0x38] sm:$0xf]
        %v857 = vld [vmem:[%s841 + $0x3c] sm:$0xf]
        %v874 = vunpack.c.l.b16 %v842
        %v875 = vunpack.c.l.b16 %v843
        %v876 = vunpack.c.l.b16 %v844
        %v877 = vunpack.c.l.b16 %v845
        %v878 = vunpack.c.l.b16 %v846
        %v879 = vunpack.c.l.b16 %v847
        %v880 = vunpack.c.l.b16 %v848
        %v881 = vunpack.c.l.b16 %v849
        %v882 = vunpack.c.l.b16 %v850
        %v883 = vunpack.c.l.b16 %v851
        %v884 = vunpack.c.l.b16 %v852
        %v885 = vunpack.c.l.b16 %v853
        %v886 = vunpack.c.l.b16 %v854
        %v887 = vunpack.c.l.b16 %v855
        %v888 = vunpack.c.l.b16 %v856
        %v889 = vunpack.c.l.b16 %v857
        %v890 = vpack.c.b16 %v875, %v874
        %v891 = vpack.c.b16 %v877, %v876
        %v892 = vpack.c.b16 %v879, %v878
        %v893 = vpack.c.b16 %v881, %v880
        %v894 = vpack.c.b16 %v883, %v882
        %v895 = vpack.c.b16 %v885, %v884
        %v896 = vpack.c.b16 %v887, %v886
        %v897 = vpack.c.b16 %v889, %v888
        %906 = vmatpush.bf16.msra.mxu0 %v897
        %907 = vmatpush.bf16.msra.mxu0 %v896
        %908 = vmatpush.bf16.msra.mxu0 %v895
        %909 = vmatpush.bf16.msra.mxu0 %v894
        %910 = vmatpush.bf16.msra.mxu0 %v893
        %911 = vmatpush.bf16.msra.mxu0 %v892
        %912 = vmatpush.bf16.msra.mxu0 %v891
        %913 = vmatpush.bf16.msra.mxu0 %v890
        %914 = vmatmul.bf16.gmra.mxu0 %v833
        %v915 = vpop.f32.mrf.mxu0
        %v916 = vadd.f32 0.0, %v915
        %v917 = vpop.f32.mrf.mxu0
        %v918 = vadd.f32 0.0, %v917
        %919 = vmatmul.bf16.gmra.mxu0 %v834
        %v920 = vpop.f32.mrf.mxu0
        %v921 = vadd.f32 0.0, %v920
        %v922 = vpop.f32.mrf.mxu0
        %v923 = vadd.f32 0.0, %v922
        %924 = vmatmul.bf16.gmra.mxu0 %v835
        %v925 = vpop.f32.mrf.mxu0
        %v926 = vadd.f32 0.0, %v925
        %v927 = vpop.f32.mrf.mxu0
        %v928 = vadd.f32 0.0, %v927
        %929 = vmatmul.bf16.gmra.mxu0 %v836
        %v930 = vpop.f32.mrf.mxu0
        %v931 = vadd.f32 0.0, %v930
        %v932 = vpop.f32.mrf.mxu0
        %v933 = vadd.f32 0.0, %v932
        %934 = vmatmul.bf16.gmra.mxu0 %v837
        %v935 = vpop.f32.mrf.mxu0
        %v936 = vadd.f32 0.0, %v935
        %v937 = vpop.f32.mrf.mxu0
        %v938 = vadd.f32 0.0, %v937
        %939 = vmatmul.bf16.gmra.mxu0 %v838
        %v940 = vpop.f32.mrf.mxu0
        %v941 = vadd.f32 0.0, %v940
        %v942 = vpop.f32.mrf.mxu0
        %v943 = vadd.f32 0.0, %v942
        %944 = vmatmul.bf16.gmra.mxu0 %v839
        %v945 = vpop.f32.mrf.mxu0
        %v946 = vadd.f32 0.0, %v945
        %v947 = vpop.f32.mrf.mxu0
        %v948 = vadd.f32 0.0, %v947
        %949 = vmatmul.bf16.gmra.mxu0 %v840
        %v950 = vpop.f32.mrf.mxu0
        %v951 = vadd.f32 0.0, %v950
        %v952 = vpop.f32.mrf.mxu0
        %v953 = vadd.f32 0.0, %v952
        %954 = vdwg.mxu0
        %v955 = vadd.f32 %v386, %v916
        %v956 = vadd.f32 %v386, %v918
        %v957 = vadd.f32 %v386, %v921
        %v958 = vadd.f32 %v386, %v923
        %v959 = vadd.f32 %v386, %v926
        %v960 = vadd.f32 %v386, %v928
        %v961 = vadd.f32 %v386, %v931
        %v962 = vadd.f32 %v386, %v933
        %v963 = vadd.f32 %v386, %v936
        %v964 = vadd.f32 %v386, %v938
        %v965 = vadd.f32 %v386, %v941
        %v966 = vadd.f32 %v386, %v943
        %v967 = vadd.f32 %v386, %v946
        %v968 = vadd.f32 %v386, %v948
        %v969 = vadd.f32 %v386, %v951
        %v970 = vadd.f32 %v386, %v953
        %v971 = vld [vmem:[#allocation2] sm:$0xf]
        %v972 = vld [vmem:[#allocation2 + $0x4] sm:$0xf]
        %v973 = vld [vmem:[#allocation2 + $0x8] sm:$0xf]
        %v974 = vld [vmem:[#allocation2 + $0xc] sm:$0xf]
        %v975 = vld [vmem:[#allocation2 + $0x10] sm:$0xf]
        %v976 = vld [vmem:[#allocation2 + $0x14] sm:$0xf]
        %v977 = vld [vmem:[#allocation2 + $0x18] sm:$0xf]
        %v978 = vld [vmem:[#allocation2 + $0x1c] sm:$0xf]
        %v979 = vld [vmem:[#allocation2 + $0x20] sm:$0xf]
        %v980 = vld [vmem:[#allocation2 + $0x24] sm:$0xf]
        %v981 = vld [vmem:[#allocation2 + $0x28] sm:$0xf]
        %v982 = vld [vmem:[#allocation2 + $0x2c] sm:$0xf]
        %v983 = vld [vmem:[#allocation2 + $0x30] sm:$0xf]
        %v984 = vld [vmem:[#allocation2 + $0x34] sm:$0xf]
        %v985 = vld [vmem:[#allocation2 + $0x38] sm:$0xf]
        %v986 = vld [vmem:[#allocation2 + $0x3c] sm:$0xf]
        %v987 = vunpack.c.l.bf16 %v971
        %v988 = vunpack.c.l.bf16 %v972
        %v989 = vunpack.c.l.bf16 %v973
        %v990 = vunpack.c.l.bf16 %v974
        %v991 = vunpack.c.l.bf16 %v975
        %v992 = vunpack.c.l.bf16 %v976
        %v993 = vunpack.c.l.bf16 %v977
        %v994 = vunpack.c.l.bf16 %v978
        %v995 = vunpack.c.l.bf16 %v979
        %v996 = vunpack.c.l.bf16 %v980
        %v997 = vunpack.c.l.bf16 %v981
        %v998 = vunpack.c.l.bf16 %v982
        %v999 = vunpack.c.l.bf16 %v983
        %v1000 = vunpack.c.l.bf16 %v984
        %v1001 = vunpack.c.l.bf16 %v985
        %v1002 = vunpack.c.l.bf16 %v986
        %v1003 = vmul.f32 %v987, %v987
        %v1004 = vmul.f32 %v988, %v988
        %v1005 = vmul.f32 %v989, %v989
        %v1006 = vmul.f32 %v990, %v990
        %v1007 = vmul.f32 %v991, %v991
        %v1008 = vmul.f32 %v992, %v992
        %v1009 = vmul.f32 %v993, %v993
        %v1010 = vmul.f32 %v994, %v994
        %v1011 = vmul.f32 %v995, %v995
        %v1012 = vmul.f32 %v996, %v996
        %v1013 = vmul.f32 %v997, %v997
        %v1014 = vmul.f32 %v998, %v998
        %v1015 = vmul.f32 %v999, %v999
        %v1016 = vmul.f32 %v1000, %v1000
        %v1017 = vmul.f32 %v1001, %v1001
        %v1018 = vmul.f32 %v1002, %v1002
        %v1019 = vsub.f32 1.0, %v1003
        %v1020 = vsub.f32 1.0, %v1004
        %v1021 = vsub.f32 1.0, %v1005
        %v1022 = vsub.f32 1.0, %v1006
        %v1023 = vsub.f32 1.0, %v1007
        %v1024 = vsub.f32 1.0, %v1008
        %v1025 = vsub.f32 1.0, %v1009
        %v1026 = vsub.f32 1.0, %v1010
        %v1027 = vsub.f32 1.0, %v1011
        %v1028 = vsub.f32 1.0, %v1012
        %v1029 = vsub.f32 1.0, %v1013
        %v1030 = vsub.f32 1.0, %v1014
        %v1031 = vsub.f32 1.0, %v1015
        %v1032 = vsub.f32 1.0, %v1016
        %v1033 = vsub.f32 1.0, %v1017
        %v1034 = vsub.f32 1.0, %v1018
        %v1035 = vmul.f32 %v955, %v1019
        %v1036 = vmul.f32 %v956, %v1020
        %v1037 = vmul.f32 %v957, %v1021
        %v1038 = vmul.f32 %v958, %v1022
        %v1039 = vmul.f32 %v959, %v1023
        %v1040 = vmul.f32 %v960, %v1024
        %v1041 = vmul.f32 %v961, %v1025
        %v1042 = vmul.f32 %v962, %v1026
        %v1043 = vmul.f32 %v963, %v1027
        %v1044 = vmul.f32 %v964, %v1028
        %v1045 = vmul.f32 %v965, %v1029
        %v1046 = vmul.f32 %v966, %v1030
        %v1047 = vmul.f32 %v967, %v1031
        %v1048 = vmul.f32 %v968, %v1032
        %v1049 = vmul.f32 %v969, %v1033
        %v1050 = vmul.f32 %v970, %v1034
        %v1051 = vpack.c.bf16 %v1036, %v1035
        %v1052 = vpack.c.bf16 %v1038, %v1037
        %v1053 = vpack.c.bf16 %v1040, %v1039
        %v1054 = vpack.c.bf16 %v1042, %v1041
        %v1055 = vpack.c.bf16 %v1044, %v1043
        %v1056 = vpack.c.bf16 %v1046, %v1045
        %v1057 = vpack.c.bf16 %v1048, %v1047
        %v1058 = vpack.c.bf16 %v1050, %v1049
        %v1059 = vld [vmem:[%s3] sm:$0xf]
        %v1060 = vld [vmem:[%s3 + $0x4] sm:$0xf]
        %v1061 = vld [vmem:[%s3 + $0x8] sm:$0xf]
        %v1062 = vld [vmem:[%s3 + $0xc] sm:$0xf]
        %v1063 = vld [vmem:[%s3 + $0x10] sm:$0xf]
        %v1064 = vld [vmem:[%s3 + $0x14] sm:$0xf]
        %v1065 = vld [vmem:[%s3 + $0x18] sm:$0xf]
        %v1066 = vld [vmem:[%s3 + $0x1c] sm:$0xf]
        %v1067 = vld [vmem:[%s3 + $0x20] sm:$0xf]
        %v1068 = vld [vmem:[%s3 + $0x24] sm:$0xf]
        %v1069 = vld [vmem:[%s3 + $0x28] sm:$0xf]
        %v1070 = vld [vmem:[%s3 + $0x2c] sm:$0xf]
        %v1071 = vld [vmem:[%s3 + $0x30] sm:$0xf]
        %v1072 = vld [vmem:[%s3 + $0x34] sm:$0xf]
        %v1073 = vld [vmem:[%s3 + $0x38] sm:$0xf]
        %v1074 = vld [vmem:[%s3 + $0x3c] sm:$0xf]
        %v1091 = vunpack.c.l.b16 %v1059
        %v1092 = vunpack.c.l.b16 %v1060
        %v1093 = vunpack.c.l.b16 %v1061
        %v1094 = vunpack.c.l.b16 %v1062
        %v1095 = vunpack.c.l.b16 %v1063
        %v1096 = vunpack.c.l.b16 %v1064
        %v1097 = vunpack.c.l.b16 %v1065
        %v1098 = vunpack.c.l.b16 %v1066
        %v1099 = vunpack.c.l.b16 %v1067
        %v1100 = vunpack.c.l.b16 %v1068
        %v1101 = vunpack.c.l.b16 %v1069
        %v1102 = vunpack.c.l.b16 %v1070
        %v1103 = vunpack.c.l.b16 %v1071
        %v1104 = vunpack.c.l.b16 %v1072
        %v1105 = vunpack.c.l.b16 %v1073
        %v1106 = vunpack.c.l.b16 %v1074
        %v1107 = vpack.c.b16 %v1092, %v1091
        %v1108 = vpack.c.b16 %v1094, %v1093
        %v1109 = vpack.c.b16 %v1096, %v1095
        %v1110 = vpack.c.b16 %v1098, %v1097
        %v1111 = vpack.c.b16 %v1100, %v1099
        %v1112 = vpack.c.b16 %v1102, %v1101
        %v1113 = vpack.c.b16 %v1104, %v1103
        %v1114 = vpack.c.b16 %v1106, %v1105
        %1123 = vmatpush.bf16.msra.mxu0 %v1114
        %1124 = vmatpush.bf16.msra.mxu0 %v1113
        %1125 = vmatpush.bf16.msra.mxu0 %v1112
        %1126 = vmatpush.bf16.msra.mxu0 %v1111
        %1127 = vmatpush.bf16.msra.mxu0 %v1110
        %1128 = vmatpush.bf16.msra.mxu0 %v1109
        %1129 = vmatpush.bf16.msra.mxu0 %v1108
        %1130 = vmatpush.bf16.msra.mxu0 %v1107
        %1131 = vmatmul.bf16.gmra.mxu0 %v1051
        %v1132 = vpop.f32.mrf.mxu0
        %v1133 = vadd.f32 0.0, %v1132
        %v1134 = vpop.f32.mrf.mxu0
        %v1135 = vadd.f32 0.0, %v1134
        %1136 = vmatmul.bf16.gmra.mxu0 %v1052
        %v1137 = vpop.f32.mrf.mxu0
        %v1138 = vadd.f32 0.0, %v1137
        %v1139 = vpop.f32.mrf.mxu0
        %v1140 = vadd.f32 0.0, %v1139
        %1141 = vmatmul.bf16.gmra.mxu0 %v1053
        %v1142 = vpop.f32.mrf.mxu0
        %v1143 = vadd.f32 0.0, %v1142
        %v1144 = vpop.f32.mrf.mxu0
        %v1145 = vadd.f32 0.0, %v1144
        %1146 = vmatmul.bf16.gmra.mxu0 %v1054
        %v1147 = vpop.f32.mrf.mxu0
        %v1148 = vadd.f32 0.0, %v1147
        %v1149 = vpop.f32.mrf.mxu0
        %v1150 = vadd.f32 0.0, %v1149
        %1151 = vmatmul.bf16.gmra.mxu0 %v1055
        %v1152 = vpop.f32.mrf.mxu0
        %v1153 = vadd.f32 0.0, %v1152
        %v1154 = vpop.f32.mrf.mxu0
        %v1155 = vadd.f32 0.0, %v1154
        %1156 = vmatmul.bf16.gmra.mxu0 %v1056
        %v1157 = vpop.f32.mrf.mxu0
        %v1158 = vadd.f32 0.0, %v1157
        %v1159 = vpop.f32.mrf.mxu0
        %v1160 = vadd.f32 0.0, %v1159
        %1161 = vmatmul.bf16.gmra.mxu0 %v1057
        %v1162 = vpop.f32.mrf.mxu0
        %v1163 = vadd.f32 0.0, %v1162
        %v1164 = vpop.f32.mrf.mxu0
        %v1165 = vadd.f32 0.0, %v1164
        %1166 = vmatmul.bf16.gmra.mxu0 %v1058
        %v1167 = vpop.f32.mrf.mxu0
        %v1168 = vadd.f32 0.0, %v1167
        %v1169 = vpop.f32.mrf.mxu0
        %v1170 = vadd.f32 0.0, %v1169
        %1171 = vdwg.mxu0
        %v1172 = vadd.f32 %v955, %v1133
        %v1173 = vadd.f32 %v956, %v1135
        %v1174 = vadd.f32 %v957, %v1138
        %v1175 = vadd.f32 %v958, %v1140
        %v1176 = vadd.f32 %v959, %v1143
        %v1177 = vadd.f32 %v960, %v1145
        %v1178 = vadd.f32 %v961, %v1148
        %v1179 = vadd.f32 %v962, %v1150
        %v1180 = vadd.f32 %v963, %v1153
        %v1181 = vadd.f32 %v964, %v1155
        %v1182 = vadd.f32 %v965, %v1158
        %v1183 = vadd.f32 %v966, %v1160
        %v1184 = vadd.f32 %v967, %v1163
        %v1185 = vadd.f32 %v968, %v1165
        %v1186 = vadd.f32 %v969, %v1168
        %v1187 = vadd.f32 %v970, %v1170
        %v1188 = vpack.c.bf16 %v1173, %v1172
        %v1189 = vpack.c.bf16 %v1175, %v1174
        %v1190 = vpack.c.bf16 %v1177, %v1176
        %v1191 = vpack.c.bf16 %v1179, %v1178
        %v1192 = vpack.c.bf16 %v1181, %v1180
        %v1193 = vpack.c.bf16 %v1183, %v1182
        %v1194 = vpack.c.bf16 %v1185, %v1184
        %v1195 = vpack.c.bf16 %v1187, %v1186
        %v1196 = vld [vmem:[%s6] sm:$0xf]
        %v1197 = vld [vmem:[%s6 + $0x4] sm:$0xf]
        %v1198 = vld [vmem:[%s6 + $0x8] sm:$0xf]
        %v1199 = vld [vmem:[%s6 + $0xc] sm:$0xf]
        %v1200 = vld [vmem:[%s6 + $0x10] sm:$0xf]
        %v1201 = vld [vmem:[%s6 + $0x14] sm:$0xf]
        %v1202 = vld [vmem:[%s6 + $0x18] sm:$0xf]
        %v1203 = vld [vmem:[%s6 + $0x1c] sm:$0xf]
        %v1204 = vld [vmem:[%s6 + $0x20] sm:$0xf]
        %v1205 = vld [vmem:[%s6 + $0x24] sm:$0xf]
        %v1206 = vld [vmem:[%s6 + $0x28] sm:$0xf]
        %v1207 = vld [vmem:[%s6 + $0x2c] sm:$0xf]
        %v1208 = vld [vmem:[%s6 + $0x30] sm:$0xf]
        %v1209 = vld [vmem:[%s6 + $0x34] sm:$0xf]
        %v1210 = vld [vmem:[%s6 + $0x38] sm:$0xf]
        %v1211 = vld [vmem:[%s6 + $0x3c] sm:$0xf]
        %v1228 = vunpack.c.l.b16 %v1196
        %v1229 = vunpack.c.l.b16 %v1197
        %v1230 = vunpack.c.l.b16 %v1198
        %v1231 = vunpack.c.l.b16 %v1199
        %v1232 = vunpack.c.l.b16 %v1200
        %v1233 = vunpack.c.l.b16 %v1201
        %v1234 = vunpack.c.l.b16 %v1202
        %v1235 = vunpack.c.l.b16 %v1203
        %v1236 = vunpack.c.l.b16 %v1204
        %v1237 = vunpack.c.l.b16 %v1205
        %v1238 = vunpack.c.l.b16 %v1206
        %v1239 = vunpack.c.l.b16 %v1207
        %v1240 = vunpack.c.l.b16 %v1208
        %v1241 = vunpack.c.l.b16 %v1209
        %v1242 = vunpack.c.l.b16 %v1210
        %v1243 = vunpack.c.l.b16 %v1211
        %v1244 = vpack.c.b16 %v1229, %v1228
        %v1245 = vpack.c.b16 %v1231, %v1230
        %v1246 = vpack.c.b16 %v1233, %v1232
        %v1247 = vpack.c.b16 %v1235, %v1234
        %v1248 = vpack.c.b16 %v1237, %v1236
        %v1249 = vpack.c.b16 %v1239, %v1238
        %v1250 = vpack.c.b16 %v1241, %v1240
        %v1251 = vpack.c.b16 %v1243, %v1242
        %1260 = vmatpush.bf16.msra.mxu0 %v1251
        %1261 = vmatpush.bf16.msra.mxu0 %v1250
        %1262 = vmatpush.bf16.msra.mxu0 %v1249
        %1263 = vmatpush.bf16.msra.mxu0 %v1248
        %1264 = vmatpush.bf16.msra.mxu0 %v1247
        %1265 = vmatpush.bf16.msra.mxu0 %v1246
        %1266 = vmatpush.bf16.msra.mxu0 %v1245
        %1267 = vmatpush.bf16.msra.mxu0 %v1244
        %1268 = vmatmul.bf16.gmra.mxu0 %v1188
        %v1269 = vpop.f32.mrf.mxu0
        %v1270 = vadd.f32 0.0, %v1269
        %v1271 = vpop.f32.mrf.mxu0
        %v1272 = vadd.f32 0.0, %v1271
        %1273 = vmatmul.bf16.gmra.mxu0 %v1189
        %v1274 = vpop.f32.mrf.mxu0
        %v1275 = vadd.f32 0.0, %v1274
        %v1276 = vpop.f32.mrf.mxu0
        %v1277 = vadd.f32 0.0, %v1276
        %1278 = vmatmul.bf16.gmra.mxu0 %v1190
        %v1279 = vpop.f32.mrf.mxu0
        %v1280 = vadd.f32 0.0, %v1279
        %v1281 = vpop.f32.mrf.mxu0
        %v1282 = vadd.f32 0.0, %v1281
        %1283 = vmatmul.bf16.gmra.mxu0 %v1191
        %v1284 = vpop.f32.mrf.mxu0
        %v1285 = vadd.f32 0.0, %v1284
        %v1286 = vpop.f32.mrf.mxu0
        %v1287 = vadd.f32 0.0, %v1286
        %1288 = vmatmul.bf16.gmra.mxu0 %v1192
        %v1289 = vpop.f32.mrf.mxu0
        %v1290 = vadd.f32 0.0, %v1289
        %v1291 = vpop.f32.mrf.mxu0
        %v1292 = vadd.f32 0.0, %v1291
        %1293 = vmatmul.bf16.gmra.mxu0 %v1193
        %v1294 = vpop.f32.mrf.mxu0
        %v1295 = vadd.f32 0.0, %v1294
        %v1296 = vpop.f32.mrf.mxu0
        %v1297 = vadd.f32 0.0, %v1296
        %1298 = vmatmul.bf16.gmra.mxu0 %v1194
        %v1299 = vpop.f32.mrf.mxu0
        %v1300 = vadd.f32 0.0, %v1299
        %v1301 = vpop.f32.mrf.mxu0
        %v1302 = vadd.f32 0.0, %v1301
        %1303 = vmatmul.bf16.gmra.mxu0 %v1195
        %v1304 = vpop.f32.mrf.mxu0
        %v1305 = vadd.f32 0.0, %v1304
        %v1306 = vpop.f32.mrf.mxu0
        %v1307 = vadd.f32 0.0, %v1306
        %1308 = vdwg.mxu0
        %1309 = vst [vmem:[%s272] sm:$0xff] %v1270
        %1310 = vst [vmem:[%s272 + $0x8] sm:$0xff] %v1272
        %1311 = vst [vmem:[%s272 + $0x10] sm:$0xff] %v1275
        %1312 = vst [vmem:[%s272 + $0x18] sm:$0xff] %v1277
        %1313 = vst [vmem:[%s272 + $0x20] sm:$0xff] %v1280
        %1314 = vst [vmem:[%s272 + $0x28] sm:$0xff] %v1282
        %1315 = vst [vmem:[%s272 + $0x30] sm:$0xff] %v1285
        %1316 = vst [vmem:[%s272 + $0x38] sm:$0xff] %v1287
        %1317 = vst [vmem:[%s272 + $0x40] sm:$0xff] %v1290
        %1318 = vst [vmem:[%s272 + $0x48] sm:$0xff] %v1292
        %1319 = vst [vmem:[%s272 + $0x50] sm:$0xff] %v1295
        %1320 = vst [vmem:[%s272 + $0x58] sm:$0xff] %v1297
        %1321 = vst [vmem:[%s272 + $0x60] sm:$0xff] %v1300
        %1322 = vst [vmem:[%s272 + $0x68] sm:$0xff] %v1302
        %1323 = vst [vmem:[%s272 + $0x70] sm:$0xff] %v1305
        %1324 = vst [vmem:[%s272 + $0x78] sm:$0xff] %v1307
        %s1325 = sand.u32 %s181, 1
        %s1326 = scalar_lea.sflag [#allocation4], %s1325
        %s1327 = sand.u32 %s181, 1
        %s1328 = smul.addr %s1327, 128
        %s1329 = scalar_lea.vmem [#allocation3], %s1328
        // Predicated region
        $region49: #{tpu_custom_call.1} parent=47 // pred_check
          %p1330 = pneg %p191
        $region50: #{tpu_custom_call.1} parent=47 // pred_check_branch
          %1332 = sbr.rel (%p1330) target = $region52
        $region51: #{tpu_custom_call.1} parent=47 // pred_region
          %s1333 = smul.u32 16, %s21
          %1335 = vsyncadd %s1326, 0
          %s1336 = smul.addr %s1333, 8
          %s1337 = scalar_lea.hbm %s7, %s1336
          %s1338 = sshll.u32 %s1329, 4
          %s1339 = int_to_ptr.vmem [resolvable:$true] %s1338
          %s1340 = sshll.u32 %s1337, 4
          %s1341 = int_to_ptr.hbm [resolvable:$true] %s1340
          %1346 = dma.vmem_to_hbm [thread:$0]  %s1339, 2048, %s1341, %s1326, 128, 128, 8
        $region52: #{tpu_custom_call.1} parent=47 // pred_fallthru
          _
      $region48: #{tpu_custom_call.1} parent=5 // pred_fallthru
        _
      %p1347 = scmp.le.s32.totalorder 2, %s16
      // Predicated region
      $region53: #{tpu_custom_call.1} parent=5 // pred_check
        %p1348 = pneg %p1347
      $region54: #{tpu_custom_call.1} parent=5 // pred_check_branch
        %1350 = sbr.rel (%p1348) target = $region56
      $region55: #{tpu_custom_call.1} parent=5 // pred_region
        %s1351 = ssub.s32 %s16, 2
        // Predicated region
        $region57: #{tpu_custom_call.1} parent=55 // pred_check
          %p1352 = pneg %p197
        $region58: #{tpu_custom_call.1} parent=55 // pred_check_branch
          %1354 = sbr.rel (%p1352) target = $region60
        $region59: #{tpu_custom_call.1} parent=55 // pred_region
          %s1355 = sand.u32 %s182, 1
          %s1356 = scalar_lea.sflag [#allocation4], %s1355
          %s1357 = sand.u32 %s182, 1
          %s1358 = smul.addr %s1357, 128
          %s1359 = scalar_lea.vmem [#allocation3], %s1358
          %1361 = dma.done %s1356, 2048
        $region60: #{tpu_custom_call.1} parent=55 // pred_fallthru
          _
      $region56: #{tpu_custom_call.1} parent=5 // pred_fallthru
        _
    $region6: #{tpu_custom_call.1} parent=1 // loop_footer
      %s20 = sadd.s32 1, %s16
    $region7: #{tpu_custom_call.1} parent=1 // loop_footer_branch
      %15 = sbr.rel target = $region3
    $region8: #{tpu_custom_call.1} parent=1 // loop_exit
      _
    %1362 = vsyncpa [#allocation4], 1
    %s1363 = scalar_lea.sflag [#allocation4], 1
    %1364 = vsyncpa %s1363, 1

</llo_original>
